<compile_context>
chip_gen: v5e
topology: v5e:2x2
jax: 0.10.0
libtpu: 0.0.40
codegen_flags: <defaults>
</compile_context>

<pallas_src>
import math
import functools

import jax
import jax.numpy as jnp
import numpy as np
from jax.experimental import pallas as pl
from jax.experimental.pallas import tpu as pltpu


# ----------------------------- small math helpers -----------------------------

def _layer_norm(x, w, b, eps=1e-5):
    mu = jnp.mean(x, axis=-1, keepdims=True)
    var = jnp.mean(jnp.square(x - mu), axis=-1, keepdims=True)
    return (x - mu) * jax.lax.rsqrt(var + eps) * w + b


def _gelu(x):
    # TODO(synk): tanh-approximate GELU; use exact erf GELU (or ReLU) if the
    # original Transformer block uses a different activation.
    return 0.5 * x * (1.0 + jnp.tanh(0.7978845608028654 * (x + 0.044715 * x * x * x)))


def sinusoidal_pos_embedding(num_positions, dim):
    # TODO(synk): fairseq padding-aware position offsets are not modeled; plain 0..S-1.
    half = dim // 2
    log_timescale = math.log(10000.0) / (half - 1)
    freq = jnp.exp(jnp.arange(half, dtype=jnp.float32) * -log_timescale)
    args = jnp.arange(num_positions, dtype=jnp.float32)[:, None] * freq[None, :]
    pe = jnp.concatenate([jnp.sin(args), jnp.cos(args)], axis=1)
    if dim % 2 == 1:
        pe = jnp.concatenate([pe, jnp.zeros((num_positions, 1), jnp.float32)], axis=1)
    return pe  # (S, D)


# ------------------------------- fused kernel ---------------------------------

def encoder_stack_kernel(x_ref, pos_ref, bias_ref,
                         wqkv_ref, bqkv_ref, wo_ref, bo_ref,
                         ln1w_ref, ln1b_ref, w1_ref, b1_ref, w2_ref, b2_ref,
                         ln2w_ref, ln2b_ref, out_ref,
                         *, num_heads, embed_scale, q_chunk):
    Bt, S, D = out_ref.shape
    H = num_heads
    hd = D // H
    G = Bt * H
    scaling = hd ** -0.5
    bf16 = jnp.bfloat16
    layer = pl.program_id(1)

    # Layer 0: fuse embed_scale * tok + positional embedding into the resident
    # activation.  out_ref keeps the same block index across the layer axis, so it
    # lives in VMEM for the whole stack and is written back to HBM only once.
    @pl.when(layer == 0)
    def _():
        out_ref[...] = embed_scale * x_ref[...] + pos_ref[...][None, :, :]

    x = out_ref[...]                                  # (Bt, S, D) f32, resident
    x_rows = x.reshape(Bt * S, D)

    # ---- QKV projection: ONE (rows, D) @ (D, 3D) bf16 MXU matmul, f32 accum ----
    qkv = jnp.dot(x_rows.astype(bf16), wqkv_ref[0],
                  preferred_element_type=jnp.float32) + bqkv_ref[0]
    q = (qkv[:, :D] * scaling).astype(bf16)
    k = qkv[:, D:2 * D].astype(bf16)
    v = qkv[:, 2 * D:].astype(bf16)

    # heads (and batch) folded into ONE leading batch dim, one transpose per
    # operand; K is produced already transposed so score matmuls imply no vxpose.
    qh = q.reshape(Bt, S, H, hd).transpose(0, 2, 1, 3).reshape(G, S, hd)
    kT = k.reshape(Bt, S, H, hd).transpose(0, 2, 3, 1).reshape(G, hd, S)
    vh = v.reshape(Bt, S, H, hd).transpose(0, 2, 1, 3).reshape(G, S, hd)

    bias = bias_ref[...][:, None, :, :]               # (Bt,1,1,S) key-pad bias (hoisted)

    wo, bo = wo_ref[0], bo_ref[0]
    ln1w, ln1b = ln1w_ref[0], ln1b_ref[0]
    w1, b1 = w1_ref[0], b1_ref[0]
    w2, b2 = w2_ref[0], b2_ref[0]
    ln2w, ln2b = ln2w_ref[0], ln2b_ref[0]

    # q-chunked attention + row-wise tail: bounds the (G, tq, S) score/softmax
    # intermediates so the kernel fits 64 MiB VMEM (v7x) at realistic S.
    tq = q_chunk
    for q0 in range(0, S, tq):
        s = jnp.einsum("gqd,gdk->gqk", qh[:, q0:q0 + tq, :], kT,
                       preferred_element_type=jnp.float32)           # (G, tq, S)
        s = s.reshape(Bt, H, tq, S) + bias
        s = s - jnp.max(s, axis=-1, keepdims=True)
        pw = jnp.exp(s)
        denom = jnp.sum(pw, axis=-1, keepdims=True)                  # (Bt,H,tq,1)
        # unnormalized bf16 weights into the context matmul; normalize the small
        # (.., hd) context afterwards with an EUP approximate reciprocal.
        ctx = jnp.einsum("gqk,gkd->gqd", pw.astype(bf16).reshape(G, tq, S), vh,
                         preferred_element_type=jnp.float32)         # (G, tq, hd)
        ctx = ctx.reshape(Bt, H, tq, hd) * pl.reciprocal(denom, approx=True)
        ctx = ctx.transpose(0, 2, 1, 3).reshape(Bt * tq, D)

        xr = x[:, q0:q0 + tq, :].reshape(Bt * tq, D)
        attn = jnp.dot(ctx.astype(bf16), wo,
                       preferred_element_type=jnp.float32) + bo
        h1 = _layer_norm(xr + attn, ln1w, ln1b)
        ff = _gelu(jnp.dot(h1.astype(bf16), w1,
                           preferred_element_type=jnp.float32) + b1)
        ff = jnp.dot(ff.astype(bf16), w2,
                     preferred_element_type=jnp.float32) + b2
        out_ref[:, q0:q0 + tq, :] = _layer_norm(h1 + ff, ln2w, ln2b).reshape(Bt, tq, D)


# ------------------------------ pallas wrapper ---------------------------------

def _tpu_config():
    """Generation-dependent tiling: big tiles / high VMEM limit on 128 MiB
    single-TC parts (v5e/v6e), smaller tiles + >=2 batch blocks on 64 MiB v7x."""
    vmem_cap = 64 * 1024 * 1024
    try:
        info = pltpu.get_tpu_info()
        vmem_cap = int(getattr(info, "vmem_capacity_bytes", vmem_cap))
    except Exception:
        pass
    if vmem_cap >= 100 * 1024 * 1024:
        return {"target_rows": 1024, "vmem_limit": 96 * 1024 * 1024,
                "need_two_blocks": False}
    return {"target_rows": 512, "vmem_limit": 48 * 1024 * 1024,
            "need_two_blocks": True}


def _pick_block_batch(B, S, *, target_rows, need_two_blocks):
    best = 1
    for bt in range(1, B + 1):
        if B % bt:
            continue
        if bt * S > max(target_rows, S):
            continue
        if need_two_blocks and (B // bt) < 2 and B >= 2:
            continue
        best = bt
    return best


def _pick_q_chunk(S):
    if S <= 256:
        return S
    for tq in (256, 128, 64, 32, 16, 8):
        if S % tq == 0:
            return tq
    return S


def mono_encoder_forward(params, input_ids, padding_idx, num_heads):
    S, B = input_ids.shape
    D = params["embed"].shape[1]
    L = params["num_layers"]
    embed_scale = math.sqrt(D)

    # Gather straight into (B, S, D): avoids an extra (S,B,D)->(B,S,D) HBM pass.
    tok_bsd = params["embed"][input_ids.T]                       # (B, S, D) f32
    pos = sinusoidal_pos_embedding(S, D)                         # (S, D) f32
    mask_sb = (input_ids == padding_idx)                         # (S, B) bool
    # additive key-padding bias, computed ONCE (hoisted out of kernels / heads)
    bias_b1s = jnp.where(mask_sb.T, -1e9, 0.0).astype(jnp.float32)[:, None, :]

    if L == 0:
        x = embed_scale * tok_bsd + pos[None]
        return jnp.transpose(x, (1, 0, 2)), mask_sb

    cfg = _tpu_config()
    Bt = _pick_block_batch(B, S, target_rows=cfg["target_rows"],
                           need_two_blocks=cfg["need_two_blocks"])
    q_chunk = _pick_q_chunk(S)

    lp = params["layers"]
    Fdim = lp["w1"].shape[-1]

    kernel = functools.partial(encoder_stack_kernel, num_heads=num_heads,
                               embed_scale=embed_scale, q_chunk=q_chunk)

    batch_map = lambda b, l: (b, 0, 0)          # constant in l -> resident / single fetch
    const_map2 = lambda b, l: (0, 0)
    layer_map = lambda b, l: (l, 0, 0)          # per-layer weight slab (pipelined)

    in_specs = [
        pl.BlockSpec((Bt, S, D), batch_map),    # token embeddings
        pl.BlockSpec((S, D), const_map2),       # positional table
        pl.BlockSpec((Bt, 1, S), batch_map),    # additive key-padding bias
    ]
    args = [tok_bsd, pos, bias_b1s]
    for name, shape in (("wqkv", (1, D, 3 * D)), ("bqkv", (1, 1, 3 * D)),
                        ("wo", (1, D, D)), ("bo", (1, 1, D)),
                        ("ln1w", (1, 1, D)), ("ln1b", (1, 1, D)),
                        ("w1", (1, D, Fdim)), ("b1", (1, 1, Fdim)),
                        ("w2", (1, Fdim, D)), ("b2", (1, 1, D)),
                        ("ln2w", (1, 1, D)), ("ln2b", (1, 1, D))):
        in_specs.append(pl.BlockSpec(shape, layer_map))
        args.append(lp[name])

    # advisory cost estimate so XLA can schedule around the fused stack
    rows = B * S
    hd = D // num_heads
    flops_layer = (2 * rows * D * 3 * D
                   + 2 * B * num_heads * S * S * hd * 2
                   + 2 * rows * D * D
                   + 2 * rows * D * Fdim * 2)
    transcend_layer = B * num_heads * S * S + rows * Fdim + 4 * rows
    w_bytes = L * ((D * 3 * D + D * D + 2 * D * Fdim) * 2
                   + (3 * D + D + Fdim + 5 * D) * 4)
    bytes_accessed = 2 * rows * D * 4 + w_bytes + B * S * 4 + S * D * 4

    out = pl.pallas_call(
        kernel,
        out_shape=jax.ShapeDtypeStruct((B, S, D), jnp.float32),
        grid=(B // Bt, L),
        in_specs=in_specs,
        out_specs=pl.BlockSpec((Bt, S, D), batch_map),
        compiler_params=pltpu.CompilerParams(
            dimension_semantics=("parallel", "arbitrary"),
            vmem_limit_bytes=cfg["vmem_limit"]),
        cost_estimate=pl.CostEstimate(flops=int(L * flops_layer),
                                      transcendentals=int(L * transcend_layer),
                                      bytes_accessed=int(bytes_accessed)),
    )(*args)

    return jnp.transpose(out, (1, 0, 2)), mask_sb          # back to (S, B, D)


# ----------------------------- parameters (stacked) -----------------------------

def init_params(key, vocab_size, padding_idx, layers, D, Fdim):
    keys = jax.random.split(key, 2)
    embed = jax.random.normal(keys[0], (vocab_size, D), jnp.float32) * (D ** -0.5)
    embed = embed.at[padding_idx].set(0.0)

    def lin(k, fan_in, fan_out, n):
        bound = 1.0 / math.sqrt(fan_in)
        w = jax.random.uniform(k, (n, fan_in, fan_out), jnp.float32, -bound, bound)
        return w.astype(jnp.bfloat16)        # matmul weights stored in bf16, y = x @ W

    stack = {}
    if layers:
        ks = jax.random.split(keys[1], 4)
        stack = {
            "wqkv": lin(ks[0], D, 3 * D, layers),
            "bqkv": jnp.zeros((layers, 1, 3 * D), jnp.float32),
            "wo": lin(ks[1], D, D, layers),
            "bo": jnp.zeros((layers, 1, D), jnp.float32),
            "ln1w": jnp.ones((layers, 1, D), jnp.float32),
            "ln1b": jnp.zeros((layers, 1, D), jnp.float32),
            "w1": lin(ks[2], D, Fdim, layers),
            "b1": jnp.zeros((layers, 1, Fdim), jnp.float32),
            "w2": lin(ks[3], Fdim, D, layers),
            "b2": jnp.zeros((layers, 1, D), jnp.float32),
            "ln2w": jnp.ones((layers, 1, D), jnp.float32),
            "ln2b": jnp.zeros((layers, 1, D), jnp.float32),
        }
    return {"embed": embed, "layers": stack, "num_layers": layers}


# ------------------------------ pure-JAX reference ------------------------------

def reference_forward(params, input_ids, padding_idx, num_heads):
    S, B = input_ids.shape
    D = params["embed"].shape[1]
    H = num_heads
    hd = D // H
    bf = jnp.bfloat16
    f32 = jnp.float32

    x = math.sqrt(D) * params["embed"][input_ids] + sinusoidal_pos_embedding(S, D)[:, None, :]
    x = jnp.transpose(x, (1, 0, 2))                       # (B, S, D) f32
    mask = (input_ids == padding_idx).T                   # (B, S)
    add_bias = jnp.where(mask, -1e9, 0.0).astype(f32)[:, None, None, :]

    for li in range(params["num_layers"]):
        p = {name: arr[li] for name, arr in params["layers"].items()}
        qkv = jnp.einsum("bsd,df->bsf", x.astype(bf), p["wqkv"],
                         preferred_element_type=f32) + p["bqkv"][0]
        q = qkv[..., :D] * hd ** -0.5
        k = qkv[..., D:2 * D]
        v = qkv[..., 2 * D:]
        qh = q.astype(bf).reshape(B, S, H, hd).transpose(0, 2, 1, 3)
        kh = k.astype(bf).reshape(B, S, H, hd).transpose(0, 2, 1, 3)
        vh = v.astype(bf).reshape(B, S, H, hd).transpose(0, 2, 1, 3)
        scores = jnp.einsum("bhqd,bhkd->bhqk", qh, kh, preferred_element_type=f32)
        scores = scores + add_bias
        pw = jax.nn.softmax(scores, axis=-1)
        ctx = jnp.einsum("bhqk,bhkd->bhqd", pw.astype(bf), vh,
                         preferred_element_type=f32)
        ctx = ctx.transpose(0, 2, 1, 3).reshape(B, S, D)
        attn = jnp.einsum("bsd,df->bsf", ctx.astype(bf), p["wo"],
                          preferred_element_type=f32) + p["bo"][0]
        h1 = _layer_norm(x + attn, p["ln1w"][0], p["ln1b"][0])
        ff = _gelu(jnp.einsum("bsd,df->bsf", h1.astype(bf), p["w1"],
                              preferred_element_type=f32) + p["b1"][0])
        ff = jnp.einsum("bsf,fd->bsd", ff.astype(bf), p["w2"],
                        preferred_element_type=f32) + p["b2"][0]
        x = _layer_norm(h1 + ff, p["ln2w"][0], p["ln2b"][0])
    return jnp.transpose(x, (1, 0, 2)), (input_ids == padding_idx)


# ------------------------------------ main --------------------------------------

if __name__ == "__main__":
    VOCAB_SIZE, PAD = 50, 0
    LAYERS, EMBED_DIM, FF_DIM, HEADS = 2, 32, 64, 4
    S, B = 8, 2

    key = jax.random.PRNGKey(0)
    pkey, dkey = jax.random.split(key)
    params = init_params(pkey, VOCAB_SIZE, PAD, LAYERS, EMBED_DIM, FF_DIM)

    input_ids = jax.random.randint(dkey, (S, B), 1, VOCAB_SIZE, dtype=jnp.int32)
    input_ids = input_ids.at[-2:, 1].set(PAD)             # some padding in batch elt 1

    src_repr, src_mask = mono_encoder_forward(params, input_ids, PAD, HEADS)
    jax.block_until_ready((src_repr, src_mask))

    ref_repr, ref_mask = reference_forward(params, input_ids, PAD, HEADS)
    assert src_repr.shape == (S, B, EMBED_DIM) and src_mask.shape == (S, B)
    # bf16 matmuls + approx softmax reciprocal -> compare at bf16-level tolerance
    np.testing.assert_allclose(np.asarray(src_repr), np.asarray(ref_repr),
                               rtol=2e-2, atol=2e-2)
    assert bool(jnp.all(src_mask == ref_mask))

    print("KERNEL_OK")
</pallas_src>

<mosaic_0001>
module attributes {stable_mosaic.version = 11 : i64} {
  func.func @encoder_stack_kernel(%arg0: i32, %arg1: i32, %arg2: memref<1x8x32xf32, #tpu.memory_space<vmem>>, %arg3: memref<8x32xf32, #tpu.memory_space<vmem>>, %arg4: memref<1x1x8xf32, #tpu.memory_space<vmem>>, %arg5: memref<1x32x96xbf16, #tpu.memory_space<vmem>>, %arg6: memref<1x1x96xf32, #tpu.memory_space<vmem>>, %arg7: memref<1x32x32xbf16, #tpu.memory_space<vmem>>, %arg8: memref<1x1x32xf32, #tpu.memory_space<vmem>>, %arg9: memref<1x1x32xf32, #tpu.memory_space<vmem>>, %arg10: memref<1x1x32xf32, #tpu.memory_space<vmem>>, %arg11: memref<1x32x64xbf16, #tpu.memory_space<vmem>>, %arg12: memref<1x1x64xf32, #tpu.memory_space<vmem>>, %arg13: memref<1x64x32xbf16, #tpu.memory_space<vmem>>, %arg14: memref<1x1x32xf32, #tpu.memory_space<vmem>>, %arg15: memref<1x1x32xf32, #tpu.memory_space<vmem>>, %arg16: memref<1x1x32xf32, #tpu.memory_space<vmem>>, %arg17: memref<1x8x32xf32, #tpu.memory_space<vmem>>) attributes {dimension_semantics = [#tpu.dimension_semantics<parallel>, #tpu.dimension_semantics<arbitrary>], iteration_bounds = array<i64: 2, 2>, scalar_prefetch = 0 : i64, scratch_operands = 0 : i64, tpu.core_type = #tpu.core_type<tc>, window_params = [{transform_indices = @transform_0, window_bounds = array<i64: 1, 8, 32>}, {pipeline_mode = #tpu.pipeline_mode<synchronous>, transform_indices = @transform_1, window_bounds = array<i64: 8, 32>}, {transform_indices = @transform_2, window_bounds = array<i64: 1, 1, 8>}, {transform_indices = @transform_3, window_bounds = array<i64: 1, 32, 96>}, {transform_indices = @transform_4, window_bounds = array<i64: 1, 1, 96>}, {transform_indices = @transform_5, window_bounds = array<i64: 1, 32, 32>}, {transform_indices = @transform_6, window_bounds = array<i64: 1, 1, 32>}, {transform_indices = @transform_7, window_bounds = array<i64: 1, 1, 32>}, {transform_indices = @transform_8, window_bounds = array<i64: 1, 1, 32>}, {transform_indices = @transform_9, window_bounds = array<i64: 1, 32, 64>}, {transform_indices = @transform_10, window_bounds = array<i64: 1, 1, 64>}, {transform_indices = @transform_11, window_bounds = array<i64: 1, 64, 32>}, {transform_indices = @transform_12, window_bounds = array<i64: 1, 1, 32>}, {transform_indices = @transform_13, window_bounds = array<i64: 1, 1, 32>}, {transform_indices = @transform_14, window_bounds = array<i64: 1, 1, 32>}, {transform_indices = @transform_15, window_bounds = array<i64: 1, 8, 32>}]} {
    %c0_i32 = arith.constant 0 : i32
    %0 = arith.cmpi eq, %arg1, %c0_i32 : i32
    %1 = arith.extui %0 : i1 to i32
    %c0_i32_0 = arith.constant 0 : i32
    %2 = arith.cmpi ne, %1, %c0_i32_0 : i32
    scf.if %2 {
      %c0_67 = arith.constant 0 : index
      %c0_68 = arith.constant 0 : index
      %c0_69 = arith.constant 0 : index
      %146 = vector.load %arg2[%c0_67, %c0_68, %c0_69] : memref<1x8x32xf32, #tpu.memory_space<vmem>>, vector<1x8x32xf32>
      %cst_70 = arith.constant 5.65685415 : f32
      %147 = vector.broadcast %cst_70 : f32 to vector<1x8x32xf32>
      %148 = arith.mulf %147, %146 : vector<1x8x32xf32>
      %c0_71 = arith.constant 0 : index
      %c0_72 = arith.constant 0 : index
      %149 = vector.load %arg3[%c0_71, %c0_72] : memref<8x32xf32, #tpu.memory_space<vmem>>, vector<8x32xf32>
      %150 = vector.shape_cast %149 : vector<8x32xf32> to vector<1x8x32xf32>
      %151 = arith.addf %148, %150 : vector<1x8x32xf32>
      %c0_73 = arith.constant 0 : index
      %c0_74 = arith.constant 0 : index
      %c0_75 = arith.constant 0 : index
      %152 = vector.load %arg17[%c0_73, %c0_74, %c0_75] : memref<1x8x32xf32, #tpu.memory_space<vmem>>, vector<1x8x32xf32>
      tpu.vector_store %arg17[%c0_73, %c0_74, %c0_75], %151 {strides = array<i32>} : memref<1x8x32xf32, #tpu.memory_space<vmem>>, vector<1x8x32xf32>,
    } else {
    }
    %c0 = arith.constant 0 : index
    %c0_1 = arith.constant 0 : index
    %c0_2 = arith.constant 0 : index
    %3 = vector.load %arg17[%c0, %c0_1, %c0_2] : memref<1x8x32xf32, #tpu.memory_space<vmem>>, vector<1x8x32xf32>
    %4 = vector.shape_cast %3 : vector<1x8x32xf32> to vector<8x32xf32>
    %5 = arith.truncf %4 : vector<8x32xf32> to vector<8x32xbf16>
    %c0_3 = arith.constant 0 : index
    %c0_4 = arith.constant 0 : index
    %c0_5 = arith.constant 0 : index
    %6 = vector.load %arg5[%c0_3, %c0_4, %c0_5] : memref<1x32x96xbf16, #tpu.memory_space<vmem>>, vector<1x32x96xbf16>
    %7 = vector.shape_cast %6 : vector<1x32x96xbf16> to vector<32x96xbf16>
    %cst = arith.constant dense<0.000000e+00> : vector<8x96xf32>
    %8 = tpu.matmul %5, %7, %cst {dimension_numbers = #tpu.dot_dimension_numbers<[1], [0], [0], [1], [0, 0, 1, 1], [], []>} : vector<8x32xbf16>, vector<32x96xbf16>, vector<8x96xf32> -> vector<8x96xf32>
    %c0_6 = arith.constant 0 : index
    %c0_7 = arith.constant 0 : index
    %c0_8 = arith.constant 0 : index
    %9 = vector.load %arg6[%c0_6, %c0_7, %c0_8] : memref<1x1x96xf32, #tpu.memory_space<vmem>>, vector<1x1x96xf32>
    %10 = vector.shape_cast %9 : vector<1x1x96xf32> to vector<1x96xf32>
    %11 = vector.broadcast %10 : vector<1x96xf32> to vector<8x96xf32>
    %12 = arith.addf %8, %11 : vector<8x96xf32>
    %13 = vector.extract_strided_slice %12 {offsets = [0, 0], sizes = [8, 32], strides = [1, 1]} : vector<8x96xf32> to vector<8x32xf32>
    %cst_9 = arith.constant 0.353553385 : f32
    %14 = vector.broadcast %cst_9 : f32 to vector<8x32xf32>
    %15 = arith.mulf %13, %14 : vector<8x32xf32>
    %16 = arith.truncf %15 : vector<8x32xf32> to vector<8x32xbf16>
    %17 = vector.extract_strided_slice %12 {offsets = [0, 32], sizes = [8, 32], strides = [1, 1]} : vector<8x96xf32> to vector<8x32xf32>
    %18 = arith.truncf %17 : vector<8x32xf32> to vector<8x32xbf16>
    %19 = vector.extract_strided_slice %12 {offsets = [0, 64], sizes = [8, 32], strides = [1, 1]} : vector<8x96xf32> to vector<8x32xf32>
    %20 = arith.truncf %19 : vector<8x32xf32> to vector<8x32xbf16>
    %21 = vector.shape_cast %16 : vector<8x32xbf16> to vector<1x8x4x8xbf16>
    %22 = tpu.transpose %21, [0, 2, 1, 3] : vector<1x8x4x8xbf16> -> vector<1x4x8x8xbf16>
    %23 = vector.shape_cast %22 : vector<1x4x8x8xbf16> to vector<4x8x8xbf16>
    %24 = vector.shape_cast %18 : vector<8x32xbf16> to vector<1x8x4x8xbf16>
    %25 = tpu.transpose %24, [0, 2, 3, 1] : vector<1x8x4x8xbf16> -> vector<1x4x8x8xbf16>
    %26 = vector.shape_cast %25 : vector<1x4x8x8xbf16> to vector<4x8x8xbf16>
    %27 = vector.shape_cast %20 : vector<8x32xbf16> to vector<1x8x4x8xbf16>
    %28 = tpu.transpose %27, [0, 2, 1, 3] : vector<1x8x4x8xbf16> -> vector<1x4x8x8xbf16>
    %29 = vector.shape_cast %28 : vector<1x4x8x8xbf16> to vector<4x8x8xbf16>
    %c0_10 = arith.constant 0 : index
    %c0_11 = arith.constant 0 : index
    %c0_12 = arith.constant 0 : index
    %30 = vector.load %arg4[%c0_10, %c0_11, %c0_12] : memref<1x1x8xf32, #tpu.memory_space<vmem>>, vector<1x1x8xf32>
    %31 = vector.shape_cast %30 : vector<1x1x8xf32> to vector<1x1x1x8xf32>
    %c0_13 = arith.constant 0 : index
    %c0_14 = arith.constant 0 : index
    %c0_15 = arith.constant 0 : index
    %32 = vector.load %arg7[%c0_13, %c0_14, %c0_15] : memref<1x32x32xbf16, #tpu.memory_space<vmem>>, vector<1x32x32xbf16>
    %33 = vector.shape_cast %32 : vector<1x32x32xbf16> to vector<32x32xbf16>
    %c0_16 = arith.constant 0 : index
    %c0_17 = arith.constant 0 : index
    %c0_18 = arith.constant 0 : index
    %34 = vector.load %arg8[%c0_16, %c0_17, %c0_18] : memref<1x1x32xf32, #tpu.memory_space<vmem>>, vector<1x1x32xf32>
    %35 = vector.shape_cast %34 : vector<1x1x32xf32> to vector<1x32xf32>
    %c0_19 = arith.constant 0 : index
    %c0_20 = arith.constant 0 : index
    %c0_21 = arith.constant 0 : index
    %36 = vector.load %arg9[%c0_19, %c0_20, %c0_21] : memref<1x1x32xf32, #tpu.memory_space<vmem>>, vector<1x1x32xf32>
    %37 = vector.shape_cast %36 : vector<1x1x32xf32> to vector<1x32xf32>
    %c0_22 = arith.constant 0 : index
    %c0_23 = arith.constant 0 : index
    %c0_24 = arith.constant 0 : index
    %38 = vector.load %arg10[%c0_22, %c0_23, %c0_24] : memref<1x1x32xf32, #tpu.memory_space<vmem>>, vector<1x1x32xf32>
    %39 = vector.shape_cast %38 : vector<1x1x32xf32> to vector<1x32xf32>
    %c0_25 = arith.constant 0 : index
    %c0_26 = arith.constant 0 : index
    %c0_27 = arith.constant 0 : index
    %40 = vector.load %arg11[%c0_25, %c0_26, %c0_27] : memref<1x32x64xbf16, #tpu.memory_space<vmem>>, vector<1x32x64xbf16>
    %41 = vector.shape_cast %40 : vector<1x32x64xbf16> to vector<32x64xbf16>
    %c0_28 = arith.constant 0 : index
    %c0_29 = arith.constant 0 : index
    %c0_30 = arith.constant 0 : index
    %42 = vector.load %arg12[%c0_28, %c0_29, %c0_30] : memref<1x1x64xf32, #tpu.memory_space<vmem>>, vector<1x1x64xf32>
    %43 = vector.shape_cast %42 : vector<1x1x64xf32> to vector<1x64xf32>
    %c0_31 = arith.constant 0 : index
    %c0_32 = arith.constant 0 : index
    %c0_33 = arith.constant 0 : index
    %44 = vector.load %arg13[%c0_31, %c0_32, %c0_33] : memref<1x64x32xbf16, #tpu.memory_space<vmem>>, vector<1x64x32xbf16>
    %45 = vector.shape_cast %44 : vector<1x64x32xbf16> to vector<64x32xbf16>
    %c0_34 = arith.constant 0 : index
    %c0_35 = arith.constant 0 : index
    %c0_36 = arith.constant 0 : index
    %46 = vector.load %arg14[%c0_34, %c0_35, %c0_36] : memref<1x1x32xf32, #tpu.memory_space<vmem>>, vector<1x1x32xf32>
    %47 = vector.shape_cast %46 : vector<1x1x32xf32> to vector<1x32xf32>
    %c0_37 = arith.constant 0 : index
    %c0_38 = arith.constant 0 : index
    %c0_39 = arith.constant 0 : index
    %48 = vector.load %arg15[%c0_37, %c0_38, %c0_39] : memref<1x1x32xf32, #tpu.memory_space<vmem>>, vector<1x1x32xf32>
    %49 = vector.shape_cast %48 : vector<1x1x32xf32> to vector<1x32xf32>
    %c0_40 = arith.constant 0 : index
    %c0_41 = arith.constant 0 : index
    %c0_42 = arith.constant 0 : index
    %50 = vector.load %arg16[%c0_40, %c0_41, %c0_42] : memref<1x1x32xf32, #tpu.memory_space<vmem>>, vector<1x1x32xf32>
    %51 = vector.shape_cast %50 : vector<1x1x32xf32> to vector<1x32xf32>
    "tpu.trace_start"() <{level = 10 : i32, message = "gqd,gdk->gqk"}> : () -> ()
    %cst_43 = arith.constant dense<0.000000e+00> : vector<4x8x8xf32>
    %52 = tpu.matmul %23, %26, %cst_43 {dimension_numbers = #tpu.dot_dimension_numbers<[2], [1], [1], [2], [0, 0, 0, 1, 1, 2], [0], [0]>} : vector<4x8x8xbf16>, vector<4x8x8xbf16>, vector<4x8x8xf32> -> vector<4x8x8xf32>
    "tpu.trace_stop"() : () -> ()
    %53 = vector.shape_cast %52 : vector<4x8x8xf32> to vector<1x4x8x8xf32>
    %54 = vector.broadcast %31 : vector<1x1x1x8xf32> to vector<1x4x8x8xf32>
    %55 = arith.addf %53, %54 : vector<1x4x8x8xf32>
    %cst_44 = arith.constant dense<0xFF800000> : vector<1x4x8xf32>
    %56 = vector.multi_reduction <maximumf>, %55, %cst_44 [3] : vector<1x4x8x8xf32> to vector<1x4x8xf32>
    %57 = vector.shape_cast %56 : vector<1x4x8xf32> to vector<1x4x8x1xf32>
    %58 = vector.broadcast %57 : vector<1x4x8x1xf32> to vector<1x4x8x8xf32>
    %59 = arith.subf %55, %58 : vector<1x4x8x8xf32>
    %60 = math.exp %59 : vector<1x4x8x8xf32>
    %cst_45 = arith.constant dense<0.000000e+00> : vector<1x4x8xf32>
    %61 = vector.multi_reduction <add>, %60, %cst_45 [3] : vector<1x4x8x8xf32> to vector<1x4x8xf32>
    %62 = vector.shape_cast %61 : vector<1x4x8xf32> to vector<1x4x8x1xf32>
    %63 = arith.truncf %60 : vector<1x4x8x8xf32> to vector<1x4x8x8xbf16>
    %64 = vector.shape_cast %63 : vector<1x4x8x8xbf16> to vector<4x8x8xbf16>
    "tpu.trace_start"() <{level = 10 : i32, message = "gqk,gkd->gqd"}> : () -> ()
    %cst_46 = arith.constant dense<0.000000e+00> : vector<4x8x8xf32>
    %65 = tpu.matmul %64, %29, %cst_46 {dimension_numbers = #tpu.dot_dimension_numbers<[2], [1], [1], [2], [0, 0, 0, 1, 1, 2], [0], [0]>} : vector<4x8x8xbf16>, vector<4x8x8xbf16>, vector<4x8x8xf32> -> vector<4x8x8xf32>
    "tpu.trace_stop"() : () -> ()
    %66 = vector.shape_cast %65 : vector<4x8x8xf32> to vector<1x4x8x8xf32>
    %67 = tpu.reciprocal %62 {approx = true} : vector<1x4x8x1xf32> -> vector<1x4x8x1xf32>
    %68 = vector.broadcast %67 : vector<1x4x8x1xf32> to vector<1x4x8x8xf32>
    %69 = arith.mulf %66, %68 : vector<1x4x8x8xf32>
    %70 = tpu.transpose %69, [0, 2, 1, 3] : vector<1x4x8x8xf32> -> vector<1x8x4x8xf32>
    %71 = vector.shape_cast %70 : vector<1x8x4x8xf32> to vector<8x32xf32>
    %72 = vector.shape_cast %3 : vector<1x8x32xf32> to vector<8x32xf32>
    %73 = arith.truncf %71 : vector<8x32xf32> to vector<8x32xbf16>
    %cst_47 = arith.constant dense<0.000000e+00> : vector<8x32xf32>
    %74 = tpu.matmul %73, %33, %cst_47 {dimension_numbers = #tpu.dot_dimension_numbers<[1], [0], [0], [1], [0, 0, 1, 1], [], []>} : vector<8x32xbf16>, vector<32x32xbf16>, vector<8x32xf32> -> vector<8x32xf32>
    %75 = vector.broadcast %35 : vector<1x32xf32> to vector<8x32xf32>
    %76 = arith.addf %74, %75 : vector<8x32xf32>
    %77 = arith.addf %72, %76 : vector<8x32xf32>
    %cst_48 = arith.constant dense<0.000000e+00> : vector<8xf32>
    %78 = vector.multi_reduction <add>, %77, %cst_48 [1] : vector<8x32xf32> to vector<8xf32>
    %79 = vector.shape_cast %78 : vector<8xf32> to vector<8x1xf32>
    %cst_49 = arith.constant 3.200000e+01 : f32
    %80 = vector.broadcast %cst_49 : f32 to vector<8x1xf32>
    %81 = arith.divf %79, %80 : vector<8x1xf32>
    %82 = vector.broadcast %81 : vector<8x1xf32> to vector<8x32xf32>
    %83 = arith.subf %77, %82 : vector<8x32xf32>
    %84 = arith.mulf %83, %83 : vector<8x32xf32>
    %cst_50 = arith.constant dense<0.000000e+00> : vector<8xf32>
    %85 = vector.multi_reduction <add>, %84, %cst_50 [1] : vector<8x32xf32> to vector<8xf32>
    %86 = vector.shape_cast %85 : vector<8xf32> to vector<8x1xf32>
    %cst_51 = arith.constant 3.200000e+01 : f32
    %87 = vector.broadcast %cst_51 : f32 to vector<8x1xf32>
    %88 = arith.divf %86, %87 : vector<8x1xf32>
    %89 = vector.broadcast %81 : vector<8x1xf32> to vector<8x32xf32>
    %90 = arith.subf %77, %89 : vector<8x32xf32>
    %cst_52 = arith.constant 9.99999974E-6 : f32
    %91 = vector.broadcast %cst_52 : f32 to vector<8x1xf32>
    %92 = arith.addf %88, %91 : vector<8x1xf32>
    %93 = math.rsqrt %92 : vector<8x1xf32>
    %94 = vector.broadcast %93 : vector<8x1xf32> to vector<8x32xf32>
    %95 = arith.mulf %90, %94 : vector<8x32xf32>
    %96 = vector.broadcast %37 : vector<1x32xf32> to vector<8x32xf32>
    %97 = arith.mulf %95, %96 : vector<8x32xf32>
    %98 = vector.broadcast %39 : vector<1x32xf32> to vector<8x32xf32>
    %99 = arith.addf %97, %98 : vector<8x32xf32>
    %100 = arith.truncf %99 : vector<8x32xf32> to vector<8x32xbf16>
    %cst_53 = arith.constant dense<0.000000e+00> : vector<8x64xf32>
    %101 = tpu.matmul %100, %41, %cst_53 {dimension_numbers = #tpu.dot_dimension_numbers<[1], [0], [0], [1], [0, 0, 1, 1], [], []>} : vector<8x32xbf16>, vector<32x64xbf16>, vector<8x64xf32> -> vector<8x64xf32>
    %102 = vector.broadcast %43 : vector<1x64xf32> to vector<8x64xf32>
    %103 = arith.addf %101, %102 : vector<8x64xf32>
    %cst_54 = arith.constant 5.000000e-01 : f32
    %104 = vector.broadcast %cst_54 : f32 to vector<8x64xf32>
    %105 = arith.mulf %104, %103 : vector<8x64xf32>
    %cst_55 = arith.constant 4.471500e-02 : f32
    %106 = vector.broadcast %cst_55 : f32 to vector<8x64xf32>
    %107 = arith.mulf %106, %103 : vector<8x64xf32>
    %108 = arith.mulf %107, %103 : vector<8x64xf32>
    %109 = arith.mulf %108, %103 : vector<8x64xf32>
    %110 = arith.addf %103, %109 : vector<8x64xf32>
    %cst_56 = arith.constant 0.797884583 : f32
    %111 = vector.broadcast %cst_56 : f32 to vector<8x64xf32>
    %112 = arith.mulf %111, %110 : vector<8x64xf32>
    %113 = math.tanh %112 : vector<8x64xf32>
    %cst_57 = arith.constant 1.000000e+00 : f32
    %114 = vector.broadcast %cst_57 : f32 to vector<8x64xf32>
    %115 = arith.addf %114, %113 : vector<8x64xf32>
    %116 = arith.mulf %105, %115 : vector<8x64xf32>
    %117 = arith.truncf %116 : vector<8x64xf32> to vector<8x64xbf16>
    %cst_58 = arith.constant dense<0.000000e+00> : vector<8x32xf32>
    %118 = tpu.matmul %117, %45, %cst_58 {dimension_numbers = #tpu.dot_dimension_numbers<[1], [0], [0], [1], [0, 0, 1, 1], [], []>} : vector<8x64xbf16>, vector<64x32xbf16>, vector<8x32xf32> -> vector<8x32xf32>
    %119 = vector.broadcast %47 : vector<1x32xf32> to vector<8x32xf32>
    %120 = arith.addf %118, %119 : vector<8x32xf32>
    %121 = arith.addf %99, %120 : vector<8x32xf32>
    %cst_59 = arith.constant dense<0.000000e+00> : vector<8xf32>
    %122 = vector.multi_reduction <add>, %121, %cst_59 [1] : vector<8x32xf32> to vector<8xf32>
    %123 = vector.shape_cast %122 : vector<8xf32> to vector<8x1xf32>
    %cst_60 = arith.constant 3.200000e+01 : f32
    %124 = vector.broadcast %cst_60 : f32 to vector<8x1xf32>
    %125 = arith.divf %123, %124 : vector<8x1xf32>
    %126 = vector.broadcast %125 : vector<8x1xf32> to vector<8x32xf32>
    %127 = arith.subf %121, %126 : vector<8x32xf32>
    %128 = arith.mulf %127, %127 : vector<8x32xf32>
    %cst_61 = arith.constant dense<0.000000e+00> : vector<8xf32>
    %129 = vector.multi_reduction <add>, %128, %cst_61 [1] : vector<8x32xf32> to vector<8xf32>
    %130 = vector.shape_cast %129 : vector<8xf32> to vector<8x1xf32>
    %cst_62 = arith.constant 3.200000e+01 : f32
    %131 = vector.broadcast %cst_62 : f32 to vector<8x1xf32>
    %132 = arith.divf %130, %131 : vector<8x1xf32>
    %133 = vector.broadcast %125 : vector<8x1xf32> to vector<8x32xf32>
    %134 = arith.subf %121, %133 : vector<8x32xf32>
    %cst_63 = arith.constant 9.99999974E-6 : f32
    %135 = vector.broadcast %cst_63 : f32 to vector<8x1xf32>
    %136 = arith.addf %132, %135 : vector<8x1xf32>
    %137 = math.rsqrt %136 : vector<8x1xf32>
    %138 = vector.broadcast %137 : vector<8x1xf32> to vector<8x32xf32>
    %139 = arith.mulf %134, %138 : vector<8x32xf32>
    %140 = vector.broadcast %49 : vector<1x32xf32> to vector<8x32xf32>
    %141 = arith.mulf %139, %140 : vector<8x32xf32>
    %142 = vector.broadcast %51 : vector<1x32xf32> to vector<8x32xf32>
    %143 = arith.addf %141, %142 : vector<8x32xf32>
    %144 = vector.shape_cast %143 : vector<8x32xf32> to vector<1x8x32xf32>
    %c0_64 = arith.constant 0 : index
    %c0_65 = arith.constant 0 : index
    %c0_66 = arith.constant 0 : index
    %145 = vector.load %arg17[%c0_64, %c0_65, %c0_66] : memref<1x8x32xf32, #tpu.memory_space<vmem>>, vector<1x8x32xf32>
    tpu.vector_store %arg17[%c0_64, %c0_65, %c0_66], %144 {strides = array<i32>} : memref<1x8x32xf32, #tpu.memory_space<vmem>>, vector<1x8x32xf32>,
    return
  }
  func.func @transform_0(%arg0: i32, %arg1: i32) -> (i32, i32, i32) {
    %c0_i32 = arith.constant 0 : i32
    %c0_i32_0 = arith.constant 0 : i32
    %c0_i32_1 = arith.constant 0 : i32
    return %arg0, %c0_i32, %c0_i32_0 : i32, i32, i32
  }
  func.func @transform_1(%arg0: i32, %arg1: i32) -> (i32, i32) {
    %c0_i32 = arith.constant 0 : i32
    %c0_i32_0 = arith.constant 0 : i32
    %c0_i32_1 = arith.constant 0 : i32
    return %c0_i32, %c0_i32_0 : i32, i32
  }
  func.func @transform_2(%arg0: i32, %arg1: i32) -> (i32, i32, i32) {
    %c0_i32 = arith.constant 0 : i32
    %c0_i32_0 = arith.constant 0 : i32
    %c0_i32_1 = arith.constant 0 : i32
    return %arg0, %c0_i32, %c0_i32_0 : i32, i32, i32
  }
  func.func @transform_3(%arg0: i32, %arg1: i32) -> (i32, i32, i32) {
    %c0_i32 = arith.constant 0 : i32
    %c0_i32_0 = arith.constant 0 : i32
    %c0_i32_1 = arith.constant 0 : i32
    return %arg1, %c0_i32, %c0_i32_0 : i32, i32, i32
  }
  func.func @transform_4(%arg0: i32, %arg1: i32) -> (i32, i32, i32) {
    %c0_i32 = arith.constant 0 : i32
    %c0_i32_0 = arith.constant 0 : i32
    %c0_i32_1 = arith.constant 0 : i32
    return %arg1, %c0_i32, %c0_i32_0 : i32, i32, i32
  }
  func.func @transform_5(%arg0: i32, %arg1: i32) -> (i32, i32, i32) {
    %c0_i32 = arith.constant 0 : i32
    %c0_i32_0 = arith.constant 0 : i32
    %c0_i32_1 = arith.constant 0 : i32
    return %arg1, %c0_i32, %c0_i32_0 : i32, i32, i32
  }
  func.func @transform_6(%arg0: i32, %arg1: i32) -> (i32, i32, i32) {
    %c0_i32 = arith.constant 0 : i32
    %c0_i32_0 = arith.constant 0 : i32
    %c0_i32_1 = arith.constant 0 : i32
    return %arg1, %c0_i32, %c0_i32_0 : i32, i32, i32
  }
  func.func @transform_7(%arg0: i32, %arg1: i32) -> (i32, i32, i32) {
    %c0_i32 = arith.constant 0 : i32
    %c0_i32_0 = arith.constant 0 : i32
    %c0_i32_1 = arith.constant 0 : i32
    return %arg1, %c0_i32, %c0_i32_0 : i32, i32, i32
  }
  func.func @transform_8(%arg0: i32, %arg1: i32) -> (i32, i32, i32) {
    %c0_i32 = arith.constant 0 : i32
    %c0_i32_0 = arith.constant 0 : i32
    %c0_i32_1 = arith.constant 0 : i32
    return %arg1, %c0_i32, %c0_i32_0 : i32, i32, i32
  }
  func.func @transform_9(%arg0: i32, %arg1: i32) -> (i32, i32, i32) {
    %c0_i32 = arith.constant 0 : i32
    %c0_i32_0 = arith.constant 0 : i32
    %c0_i32_1 = arith.constant 0 : i32
    return %arg1, %c0_i32, %c0_i32_0 : i32, i32, i32
  }
  func.func @transform_10(%arg0: i32, %arg1: i32) -> (i32, i32, i32) {
    %c0_i32 = arith.constant 0 : i32
    %c0_i32_0 = arith.constant 0 : i32
    %c0_i32_1 = arith.constant 0 : i32
    return %arg1, %c0_i32, %c0_i32_0 : i32, i32, i32
  }
  func.func @transform_11(%arg0: i32, %arg1: i32) -> (i32, i32, i32) {
    %c0_i32 = arith.constant 0 : i32
    %c0_i32_0 = arith.constant 0 : i32
    %c0_i32_1 = arith.constant 0 : i32
    return %arg1, %c0_i32, %c0_i32_0 : i32, i32, i32
  }
  func.func @transform_12(%arg0: i32, %arg1: i32) -> (i32, i32, i32) {
    %c0_i32 = arith.constant 0 : i32
    %c0_i32_0 = arith.constant 0 : i32
    %c0_i32_1 = arith.constant 0 : i32
    return %arg1, %c0_i32, %c0_i32_0 : i32, i32, i32
  }
  func.func @transform_13(%arg0: i32, %arg1: i32) -> (i32, i32, i32) {
    %c0_i32 = arith.constant 0 : i32
    %c0_i32_0 = arith.constant 0 : i32
    %c0_i32_1 = arith.constant 0 : i32
    return %arg1, %c0_i32, %c0_i32_0 : i32, i32, i32
  }
  func.func @transform_14(%arg0: i32, %arg1: i32) -> (i32, i32, i32) {
    %c0_i32 = arith.constant 0 : i32
    %c0_i32_0 = arith.constant 0 : i32
    %c0_i32_1 = arith.constant 0 : i32
    return %arg1, %c0_i32, %c0_i32_0 : i32, i32, i32
  }
  func.func @transform_15(%arg0: i32, %arg1: i32) -> (i32, i32, i32) {
    %c0_i32 = arith.constant 0 : i32
    %c0_i32_0 = arith.constant 0 : i32
    %c0_i32_1 = arith.constant 0 : i32
    return %arg0, %c0_i32, %c0_i32_0 : i32, i32, i32
  }
}

</mosaic_0001>

<llo_original>
// kernel: tpu_custom_call.1
$region0: #{tpu_custom_call.1}
  #allocation0 [shape = 'u32[]', space=smem, size = 0x4, offset = 0x4, fixed_abs, tag = 'smem constant byte address 0x4 - core index']
  #allocation1 [shape = 'u32[72,128]{1,0:T(1,128)}', space=vmem, size = 0x9000, scoped, tag = 'internal scratch']
  %s0 = inlined_call_operand.hbm [shape: f32[2,8,32], index: 0, kind: input, shape index: {}]
  %s1 = inlined_call_operand.hbm [shape: f32[8,32], index: 1, kind: input, shape index: {}]
  %s2 = inlined_call_operand.hbm [shape: f32[2,1,8], index: 2, kind: input, shape index: {}]
  %s3 = inlined_call_operand.vmem [shape: bf16[2,32,96], index: 3, kind: input, shape index: {}]
  %s4 = inlined_call_operand.vmem [shape: f32[2,1,96], index: 4, kind: input, shape index: {}]
  %s5 = inlined_call_operand.vmem [shape: bf16[2,32,32], index: 5, kind: input, shape index: {}]
  %s6 = inlined_call_operand.vmem [shape: f32[2,1,32], index: 6, kind: input, shape index: {}]
  %s7 = inlined_call_operand.hbm [shape: f32[2,1,32], index: 7, kind: input, shape index: {}]
  %s8 = inlined_call_operand.vmem [shape: f32[2,1,32], index: 8, kind: input, shape index: {}]
  %s9 = inlined_call_operand.vmem [shape: bf16[2,32,64], index: 9, kind: input, shape index: {}]
  %s10 = inlined_call_operand.vmem [shape: f32[2,1,64], index: 10, kind: input, shape index: {}]
  %s11 = inlined_call_operand.vmem [shape: bf16[2,64,32], index: 11, kind: input, shape index: {}]
  %s12 = inlined_call_operand.vmem [shape: f32[2,1,32], index: 12, kind: input, shape index: {}]
  %s13 = inlined_call_operand.hbm [shape: f32[2,1,32], index: 13, kind: input, shape index: {}]
  %s14 = inlined_call_operand.vmem [shape: f32[2,1,32], index: 14, kind: input, shape index: {}]
  %s15 = inlined_call_operand.hbm [shape: f32[2,8,32], index: 15, kind: output, shape index: {}]
  %s16 = sld [smem:[#allocation0]]
  $region117: #{tpu_custom_call.1} parent=0
    _
  %s18 = ssub.s32 1, %s16
  %s19 = scalar_select 0, %s18, %s16
  $region1: #{tpu_custom_call.1} parent=0
    #allocation2 [shape = 'u8[8192]{0}', space=vmem, size = 0x2000, scoped, tag = 'input window, operand 0']
    #allocation3 [shape = 's32[2]{0}', space=sflag, size = 0x8, scoped, tag = 'scoped memory for tpu_custom_call.1']
    #allocation4 [shape = 's32[2]{0}', space=sflag, size = 0x8, scoped, tag = 'scoped memory for tpu_custom_call.1']
    #allocation5 [shape = 'u8[4096]{0}', space=vmem, size = 0x1000, scoped, tag = 'input window, operand 1, single buffered']
    #allocation6 [shape = 's32[1]{0}', space=sflag, size = 0x4, scoped, tag = 'scoped memory for tpu_custom_call.1']
    #allocation7 [shape = 'u8[1024]{0}', space=vmem, size = 0x400, scoped, tag = 'input window, operand 2']
    #allocation8 [shape = 'u8[1024]{0}', space=vmem, size = 0x400, scoped, tag = 'input window, operand 7']
    #allocation9 [shape = 'u8[1024]{0}', space=vmem, size = 0x400, scoped, tag = 'input window, operand 13']
    #allocation10 [shape = 'u8[8192]{0}', space=vmem, size = 0x2000, scoped, tag = 'output window, operand 0']
    %20 = vsyncpa [#allocation3], 0
    %s21 = scalar_lea.sflag [#allocation3], 1
    %22 = vsyncpa %s21, 0
    %23 = vsyncpa [#allocation6], 0
    %24 = vsyncpa [#allocation4], 0
    %s25 = scalar_lea.sflag [#allocation4], 1
    %26 = vsyncpa %s25, 0
    loop: start=0, step=1, limit=6
    $region2: #{tpu_custom_call.1} parent=1 // loop_pre_header
      _
    $region3: #{tpu_custom_call.1} parent=1 // loop_header
      %s28 = sphi 0, %s32
      %p29 = scmp.ge.s32.totalorder %s28, 6
      %s35 = sphi 0, %s47
      %s36 = sphi 0, %s43
      %s37 = sphi 0, %s35
      %s38 = sphi 0, %s36
      %s39 = sphi 0, %s37
      %s40 = sphi 0, %s38
      %s50 = sphi 0, %s52
      %s53 = sphi 0, %s50
      %s54 = sphi 0, %s53
      %s70 = sphi 0, %s54
      %s74 = sphi 0, %s74
      %s76 = sphi 0, %s74
      %s77 = sphi 0, %s76
      %s91 = sphi 0, %s77
      %s97 = sphi 0, %s99
      %s100 = sphi 0, %s97
      %s101 = sphi 0, %s100
      %s117 = sphi 0, %s101
      %s123 = sphi 0, %s125
      %s126 = sphi 0, %s123
      %s127 = sphi 0, %s126
      %s143 = sphi 0, %s127
      %s149 = sphi 0, %s151
      %s152 = sphi 0, %s149
      %s153 = sphi 0, %s152
      %s169 = sphi 0, %s153
      %s175 = sphi 0, %s177
      %s178 = sphi 0, %s175
      %s179 = sphi 0, %s178
      %s195 = sphi 0, %s179
      %s201 = sphi 0, %s203
      %s204 = sphi 0, %s201
      %s205 = sphi 0, %s204
      %s221 = sphi 0, %s205
      %s227 = sphi 0, %s229
      %s230 = sphi 0, %s227
      %s231 = sphi 0, %s230
      %s247 = sphi 0, %s231
      %s253 = sphi 0, %s255
      %s256 = sphi 0, %s253
      %s257 = sphi 0, %s256
      %s273 = sphi 0, %s257
      %s279 = sphi 0, %s281
      %s282 = sphi 0, %s279
      %s283 = sphi 0, %s282
      %s299 = sphi 0, %s283
      %s305 = sphi 0, %s307
      %s308 = sphi 0, %s305
      %s309 = sphi 0, %s308
      %s325 = sphi 0, %s309
      %s331 = sphi 0, %s333
      %s334 = sphi 0, %s331
      %s335 = sphi 0, %s334
      %s351 = sphi 0, %s335
      %s357 = sphi 0, %s359
      %s360 = sphi 0, %s357
      %s361 = sphi 0, %s360
      %s377 = sphi 0, %s361
      %s383 = sphi 0, %s385
      %s386 = sphi 0, %s383
      %s387 = sphi 0, %s386
      %s403 = sphi 0, %s387
      %s409 = sphi 0, %s411
      %s412 = sphi 0, %s409
      %s413 = sphi 0, %s412
      %s429 = sphi 0, %s413
      %s435 = sphi 0, %s437
      %s438 = sphi 0, %s435
      %s439 = sphi 0, %s438
      %s455 = sphi 0, %s439
    $region4: #{tpu_custom_call.1} parent=1 // loop_header_branch
      %31 = sbr.rel (%p29) target = $region8
    $region5: #{tpu_custom_call.1} parent=1 // loop_body
      %s33 = ssub.s32 %s28, 1
      %s34 = ssub.s32 %s28, 2
      %s41 = sadd.s32 1, %s36
      %p42 = scmp.ge.s32.totalorder %s41, 2
      %s43 = scalar_select %p42, 0, %s41
      %s44 = sadd.s32 1, %s35
      %s45 = scalar_select %p42, %s44, %s35
      %p46 = scmp.ge.s32.totalorder %s45, 2
      %s47 = scalar_select %p46, 0, %s45
      %s48 = ssub.s32 %s35, %s47
      %p49 = scmp.eq.s32.totalorder %s48, 0
      %s51 = sadd.s32 %s50, 1
      %s52 = scalar_select %p49, %s50, %s51
      %p55 = pneg %p49
      %p56 = scmp.eq.s32.totalorder %s28, 3
      %p57 = por %p55, %p56
      %p58 = scmp.ne.s32.totalorder %s50, %s53
      %p59 = scmp.eq.s32.totalorder %s28, 0
      %p60 = por %p58, %p59
      %p61 = scmp.ne.s32.totalorder %s50, %s53
      %p62 = scmp.eq.s32.totalorder %s33, 3
      %p63 = por %p61, %p62
      %p64 = scmp.ne.s32.totalorder %s53, %s54
      %p65 = scmp.eq.s32.totalorder %s33, 0
      %p66 = por %p64, %p65
      %p67 = scmp.ne.s32.totalorder %s53, %s54
      %p68 = scmp.eq.s32.totalorder %s34, 3
      %p69 = por %p67, %p68
      %p71 = scmp.ne.s32.totalorder %s54, %s70
      %p72 = scmp.eq.s32.totalorder %s34, 0
      %p73 = por %p71, %p72
      %s75 = sadd.s32 %s74, 1
      %p78 = scmp.eq.s32.totalorder %s28, 3
      %p79 = scmp.ne.s32.totalorder %s74, %s76
      %p80 = scmp.eq.s32.totalorder %s28, 0
      %p81 = por %p79, %p80
      %p82 = scmp.ne.s32.totalorder %s74, %s76
      %p83 = scmp.eq.s32.totalorder %s33, 3
      %p84 = por %p82, %p83
      %p85 = scmp.ne.s32.totalorder %s76, %s77
      %p86 = scmp.eq.s32.totalorder %s33, 0
      %p87 = por %p85, %p86
      %p88 = scmp.ne.s32.totalorder %s76, %s77
      %p89 = scmp.eq.s32.totalorder %s34, 3
      %p90 = por %p88, %p89
      %p92 = scmp.ne.s32.totalorder %s77, %s91
      %p93 = scmp.eq.s32.totalorder %s34, 0
      %p94 = por %p92, %p93
      %s95 = ssub.s32 %s35, %s47
      %p96 = scmp.eq.s32.totalorder %s95, 0
      %s98 = sadd.s32 %s97, 1
      %s99 = scalar_select %p96, %s97, %s98
      %p102 = pneg %p96
      %p103 = scmp.eq.s32.totalorder %s28, 3
      %p104 = por %p102, %p103
      %p105 = scmp.ne.s32.totalorder %s97, %s100
      %p106 = scmp.eq.s32.totalorder %s28, 0
      %p107 = por %p105, %p106
      %p108 = scmp.ne.s32.totalorder %s97, %s100
      %p109 = scmp.eq.s32.totalorder %s33, 3
      %p110 = por %p108, %p109
      %p111 = scmp.ne.s32.totalorder %s100, %s101
      %p112 = scmp.eq.s32.totalorder %s33, 0
      %p113 = por %p111, %p112
      %p114 = scmp.ne.s32.totalorder %s100, %s101
      %p115 = scmp.eq.s32.totalorder %s34, 3
      %p116 = por %p114, %p115
      %p118 = scmp.ne.s32.totalorder %s101, %s117
      %p119 = scmp.eq.s32.totalorder %s34, 0
      %p120 = por %p118, %p119
      %s121 = ssub.s32 %s36, %s43
      %p122 = scmp.eq.s32.totalorder %s121, 0
      %s124 = sadd.s32 %s123, 1
      %s125 = scalar_select %p122, %s123, %s124
      %p128 = pneg %p122
      %p129 = scmp.eq.s32.totalorder %s28, 3
      %p130 = por %p128, %p129
      %p131 = scmp.ne.s32.totalorder %s123, %s126
      %p132 = scmp.eq.s32.totalorder %s28, 0
      %p133 = por %p131, %p132
      %p134 = scmp.ne.s32.totalorder %s123, %s126
      %p135 = scmp.eq.s32.totalorder %s33, 3
      %p136 = por %p134, %p135
      %p137 = scmp.ne.s32.totalorder %s126, %s127
      %p138 = scmp.eq.s32.totalorder %s33, 0
      %p139 = por %p137, %p138
      %p140 = scmp.ne.s32.totalorder %s126, %s127
      %p141 = scmp.eq.s32.totalorder %s34, 3
      %p142 = por %p140, %p141
      %p144 = scmp.ne.s32.totalorder %s127, %s143
      %p145 = scmp.eq.s32.totalorder %s34, 0
      %p146 = por %p144, %p145
      %s147 = ssub.s32 %s36, %s43
      %p148 = scmp.eq.s32.totalorder %s147, 0
      %s150 = sadd.s32 %s149, 1
      %s151 = scalar_select %p148, %s149, %s150
      %p154 = pneg %p148
      %p155 = scmp.eq.s32.totalorder %s28, 3
      %p156 = por %p154, %p155
      %p157 = scmp.ne.s32.totalorder %s149, %s152
      %p158 = scmp.eq.s32.totalorder %s28, 0
      %p159 = por %p157, %p158
      %p160 = scmp.ne.s32.totalorder %s149, %s152
      %p161 = scmp.eq.s32.totalorder %s33, 3
      %p162 = por %p160, %p161
      %p163 = scmp.ne.s32.totalorder %s152, %s153
      %p164 = scmp.eq.s32.totalorder %s33, 0
      %p165 = por %p163, %p164
      %p166 = scmp.ne.s32.totalorder %s152, %s153
      %p167 = scmp.eq.s32.totalorder %s34, 3
      %p168 = por %p166, %p167
      %p170 = scmp.ne.s32.totalorder %s153, %s169
      %p171 = scmp.eq.s32.totalorder %s34, 0
      %p172 = por %p170, %p171
      %s173 = ssub.s32 %s36, %s43
      %p174 = scmp.eq.s32.totalorder %s173, 0
      %s176 = sadd.s32 %s175, 1
      %s177 = scalar_select %p174, %s175, %s176
      %p180 = pneg %p174
      %p181 = scmp.eq.s32.totalorder %s28, 3
      %p182 = por %p180, %p181
      %p183 = scmp.ne.s32.totalorder %s175, %s178
      %p184 = scmp.eq.s32.totalorder %s28, 0
      %p185 = por %p183, %p184
      %p186 = scmp.ne.s32.totalorder %s175, %s178
      %p187 = scmp.eq.s32.totalorder %s33, 3
      %p188 = por %p186, %p187
      %p189 = scmp.ne.s32.totalorder %s178, %s179
      %p190 = scmp.eq.s32.totalorder %s33, 0
      %p191 = por %p189, %p190
      %p192 = scmp.ne.s32.totalorder %s178, %s179
      %p193 = scmp.eq.s32.totalorder %s34, 3
      %p194 = por %p192, %p193
      %p196 = scmp.ne.s32.totalorder %s179, %s195
      %p197 = scmp.eq.s32.totalorder %s34, 0
      %p198 = por %p196, %p197
      %s199 = ssub.s32 %s36, %s43
      %p200 = scmp.eq.s32.totalorder %s199, 0
      %s202 = sadd.s32 %s201, 1
      %s203 = scalar_select %p200, %s201, %s202
      %p206 = pneg %p200
      %p207 = scmp.eq.s32.totalorder %s28, 3
      %p208 = por %p206, %p207
      %p209 = scmp.ne.s32.totalorder %s201, %s204
      %p210 = scmp.eq.s32.totalorder %s28, 0
      %p211 = por %p209, %p210
      %p212 = scmp.ne.s32.totalorder %s201, %s204
      %p213 = scmp.eq.s32.totalorder %s33, 3
      %p214 = por %p212, %p213
      %p215 = scmp.ne.s32.totalorder %s204, %s205
      %p216 = scmp.eq.s32.totalorder %s33, 0
      %p217 = por %p215, %p216
      %p218 = scmp.ne.s32.totalorder %s204, %s205
      %p219 = scmp.eq.s32.totalorder %s34, 3
      %p220 = por %p218, %p219
      %p222 = scmp.ne.s32.totalorder %s205, %s221
      %p223 = scmp.eq.s32.totalorder %s34, 0
      %p224 = por %p222, %p223
      %s225 = ssub.s32 %s36, %s43
      %p226 = scmp.eq.s32.totalorder %s225, 0
      %s228 = sadd.s32 %s227, 1
      %s229 = scalar_select %p226, %s227, %s228
      %p232 = pneg %p226
      %p233 = scmp.eq.s32.totalorder %s28, 3
      %p234 = por %p232, %p233
      %p235 = scmp.ne.s32.totalorder %s227, %s230
      %p236 = scmp.eq.s32.totalorder %s28, 0
      %p237 = por %p235, %p236
      %p238 = scmp.ne.s32.totalorder %s227, %s230
      %p239 = scmp.eq.s32.totalorder %s33, 3
      %p240 = por %p238, %p239
      %p241 = scmp.ne.s32.totalorder %s230, %s231
      %p242 = scmp.eq.s32.totalorder %s33, 0
      %p243 = por %p241, %p242
      %p244 = scmp.ne.s32.totalorder %s230, %s231
      %p245 = scmp.eq.s32.totalorder %s34, 3
      %p246 = por %p244, %p245
      %p248 = scmp.ne.s32.totalorder %s231, %s247
      %p249 = scmp.eq.s32.totalorder %s34, 0
      %p250 = por %p248, %p249
      %s251 = ssub.s32 %s36, %s43
      %p252 = scmp.eq.s32.totalorder %s251, 0
      %s254 = sadd.s32 %s253, 1
      %s255 = scalar_select %p252, %s253, %s254
      %p258 = pneg %p252
      %p259 = scmp.eq.s32.totalorder %s28, 3
      %p260 = por %p258, %p259
      %p261 = scmp.ne.s32.totalorder %s253, %s256
      %p262 = scmp.eq.s32.totalorder %s28, 0
      %p263 = por %p261, %p262
      %p264 = scmp.ne.s32.totalorder %s253, %s256
      %p265 = scmp.eq.s32.totalorder %s33, 3
      %p266 = por %p264, %p265
      %p267 = scmp.ne.s32.totalorder %s256, %s257
      %p268 = scmp.eq.s32.totalorder %s33, 0
      %p269 = por %p267, %p268
      %p270 = scmp.ne.s32.totalorder %s256, %s257
      %p271 = scmp.eq.s32.totalorder %s34, 3
      %p272 = por %p270, %p271
      %p274 = scmp.ne.s32.totalorder %s257, %s273
      %p275 = scmp.eq.s32.totalorder %s34, 0
      %p276 = por %p274, %p275
      %s277 = ssub.s32 %s36, %s43
      %p278 = scmp.eq.s32.totalorder %s277, 0
      %s280 = sadd.s32 %s279, 1
      %s281 = scalar_select %p278, %s279, %s280
      %p284 = pneg %p278
      %p285 = scmp.eq.s32.totalorder %s28, 3
      %p286 = por %p284, %p285
      %p287 = scmp.ne.s32.totalorder %s279, %s282
      %p288 = scmp.eq.s32.totalorder %s28, 0
      %p289 = por %p287, %p288
      %p290 = scmp.ne.s32.totalorder %s279, %s282
      %p291 = scmp.eq.s32.totalorder %s33, 3
      %p292 = por %p290, %p291
      %p293 = scmp.ne.s32.totalorder %s282, %s283
      %p294 = scmp.eq.s32.totalorder %s33, 0
      %p295 = por %p293, %p294
      %p296 = scmp.ne.s32.totalorder %s282, %s283
      %p297 = scmp.eq.s32.totalorder %s34, 3
      %p298 = por %p296, %p297
      %p300 = scmp.ne.s32.totalorder %s283, %s299
      %p301 = scmp.eq.s32.totalorder %s34, 0
      %p302 = por %p300, %p301
      %s303 = ssub.s32 %s36, %s43
      %p304 = scmp.eq.s32.totalorder %s303, 0
      %s306 = sadd.s32 %s305, 1
      %s307 = scalar_select %p304, %s305, %s306
      %p310 = pneg %p304
      %p311 = scmp.eq.s32.totalorder %s28, 3
      %p312 = por %p310, %p311
      %p313 = scmp.ne.s32.totalorder %s305, %s308
      %p314 = scmp.eq.s32.totalorder %s28, 0
      %p315 = por %p313, %p314
      %p316 = scmp.ne.s32.totalorder %s305, %s308
      %p317 = scmp.eq.s32.totalorder %s33, 3
      %p318 = por %p316, %p317
      %p319 = scmp.ne.s32.totalorder %s308, %s309
      %p320 = scmp.eq.s32.totalorder %s33, 0
      %p321 = por %p319, %p320
      %p322 = scmp.ne.s32.totalorder %s308, %s309
      %p323 = scmp.eq.s32.totalorder %s34, 3
      %p324 = por %p322, %p323
      %p326 = scmp.ne.s32.totalorder %s309, %s325
      %p327 = scmp.eq.s32.totalorder %s34, 0
      %p328 = por %p326, %p327
      %s329 = ssub.s32 %s36, %s43
      %p330 = scmp.eq.s32.totalorder %s329, 0
      %s332 = sadd.s32 %s331, 1
      %s333 = scalar_select %p330, %s331, %s332
      %p336 = pneg %p330
      %p337 = scmp.eq.s32.totalorder %s28, 3
      %p338 = por %p336, %p337
      %p339 = scmp.ne.s32.totalorder %s331, %s334
      %p340 = scmp.eq.s32.totalorder %s28, 0
      %p341 = por %p339, %p340
      %p342 = scmp.ne.s32.totalorder %s331, %s334
      %p343 = scmp.eq.s32.totalorder %s33, 3
      %p344 = por %p342, %p343
      %p345 = scmp.ne.s32.totalorder %s334, %s335
      %p346 = scmp.eq.s32.totalorder %s33, 0
      %p347 = por %p345, %p346
      %p348 = scmp.ne.s32.totalorder %s334, %s335
      %p349 = scmp.eq.s32.totalorder %s34, 3
      %p350 = por %p348, %p349
      %p352 = scmp.ne.s32.totalorder %s335, %s351
      %p353 = scmp.eq.s32.totalorder %s34, 0
      %p354 = por %p352, %p353
      %s355 = ssub.s32 %s36, %s43
      %p356 = scmp.eq.s32.totalorder %s355, 0
      %s358 = sadd.s32 %s357, 1
      %s359 = scalar_select %p356, %s357, %s358
      %p362 = pneg %p356
      %p363 = scmp.eq.s32.totalorder %s28, 3
      %p364 = por %p362, %p363
      %p365 = scmp.ne.s32.totalorder %s357, %s360
      %p366 = scmp.eq.s32.totalorder %s28, 0
      %p367 = por %p365, %p366
      %p368 = scmp.ne.s32.totalorder %s357, %s360
      %p369 = scmp.eq.s32.totalorder %s33, 3
      %p370 = por %p368, %p369
      %p371 = scmp.ne.s32.totalorder %s360, %s361
      %p372 = scmp.eq.s32.totalorder %s33, 0
      %p373 = por %p371, %p372
      %p374 = scmp.ne.s32.totalorder %s360, %s361
      %p375 = scmp.eq.s32.totalorder %s34, 3
      %p376 = por %p374, %p375
      %p378 = scmp.ne.s32.totalorder %s361, %s377
      %p379 = scmp.eq.s32.totalorder %s34, 0
      %p380 = por %p378, %p379
      %s381 = ssub.s32 %s36, %s43
      %p382 = scmp.eq.s32.totalorder %s381, 0
      %s384 = sadd.s32 %s383, 1
      %s385 = scalar_select %p382, %s383, %s384
      %p388 = pneg %p382
      %p389 = scmp.eq.s32.totalorder %s28, 3
      %p390 = por %p388, %p389
      %p391 = scmp.ne.s32.totalorder %s383, %s386
      %p392 = scmp.eq.s32.totalorder %s28, 0
      %p393 = por %p391, %p392
      %p394 = scmp.ne.s32.totalorder %s383, %s386
      %p395 = scmp.eq.s32.totalorder %s33, 3
      %p396 = por %p394, %p395
      %p397 = scmp.ne.s32.totalorder %s386, %s387
      %p398 = scmp.eq.s32.totalorder %s33, 0
      %p399 = por %p397, %p398
      %p400 = scmp.ne.s32.totalorder %s386, %s387
      %p401 = scmp.eq.s32.totalorder %s34, 3
      %p402 = por %p400, %p401
      %p404 = scmp.ne.s32.totalorder %s387, %s403
      %p405 = scmp.eq.s32.totalorder %s34, 0
      %p406 = por %p404, %p405
      %s407 = ssub.s32 %s36, %s43
      %p408 = scmp.eq.s32.totalorder %s407, 0
      %s410 = sadd.s32 %s409, 1
      %s411 = scalar_select %p408, %s409, %s410
      %p414 = pneg %p408
      %p415 = scmp.eq.s32.totalorder %s28, 3
      %p416 = por %p414, %p415
      %p417 = scmp.ne.s32.totalorder %s409, %s412
      %p418 = scmp.eq.s32.totalorder %s28, 0
      %p419 = por %p417, %p418
      %p420 = scmp.ne.s32.totalorder %s409, %s412
      %p421 = scmp.eq.s32.totalorder %s33, 3
      %p422 = por %p420, %p421
      %p423 = scmp.ne.s32.totalorder %s412, %s413
      %p424 = scmp.eq.s32.totalorder %s33, 0
      %p425 = por %p423, %p424
      %p426 = scmp.ne.s32.totalorder %s412, %s413
      %p427 = scmp.eq.s32.totalorder %s34, 3
      %p428 = por %p426, %p427
      %p430 = scmp.ne.s32.totalorder %s413, %s429
      %p431 = scmp.eq.s32.totalorder %s34, 0
      %p432 = por %p430, %p431
      %s433 = ssub.s32 %s35, %s47
      %p434 = scmp.eq.s32.totalorder %s433, 0
      %s436 = sadd.s32 %s435, 1
      %s437 = scalar_select %p434, %s435, %s436
      %p440 = pneg %p434
      %p441 = scmp.eq.s32.totalorder %s28, 3
      %p442 = por %p440, %p441
      %p443 = scmp.ne.s32.totalorder %s435, %s438
      %p444 = scmp.eq.s32.totalorder %s28, 0
      %p445 = por %p443, %p444
      %p446 = scmp.ne.s32.totalorder %s435, %s438
      %p447 = scmp.eq.s32.totalorder %s33, 3
      %p448 = por %p446, %p447
      %p449 = scmp.ne.s32.totalorder %s438, %s439
      %p450 = scmp.eq.s32.totalorder %s33, 0
      %p451 = por %p449, %p450
      %p452 = scmp.ne.s32.totalorder %s438, %s439
      %p453 = scmp.eq.s32.totalorder %s34, 3
      %p454 = por %p452, %p453
      %p456 = scmp.ne.s32.totalorder %s439, %s455
      %p457 = scmp.eq.s32.totalorder %s34, 0
      %p458 = por %p456, %p457
      %p459 = scmp.le.s32.totalorder 1, %s28
      %p460 = scmp.lt.s32.totalorder %s28, 5
      %p461 = pnand %p459, %p460
      %p462 = pneg %p461
      // Predicated region
      $region9: #{tpu_custom_call.1} parent=5 // pred_check
        _
      $region10: #{tpu_custom_call.1} parent=5 // pred_check_branch
        %464 = sbr.rel (%p461) target = $region12
      $region11: #{tpu_custom_call.1} parent=5 // pred_region
        %s465 = ssub.s32 %s28, 1
        // Predicated region
        $region13: #{tpu_custom_call.1} parent=11 // pred_check
          %p466 = pneg %p87
        $region14: #{tpu_custom_call.1} parent=11 // pred_check_branch
          %468 = sbr.rel (%p466) target = $region16
        $region15: #{tpu_custom_call.1} parent=11 // pred_region
          %470 = vsyncadd [#allocation6], 0
          %s472 = sshll.u32 %s1, 4
          %s473 = int_to_ptr.hbm [resolvable:$true] %s472
          %s474 = sshll.u32 [#allocation5], 4
          %s475 = int_to_ptr.vmem [resolvable:$true] %s474
          %477 = dma.hbm_to_vmem [thread:$0]  %s473, 128, %s475, [#allocation6]
        $region16: #{tpu_custom_call.1} parent=11 // pred_fallthru
          _
      $region12: #{tpu_custom_call.1} parent=5 // pred_fallthru
        _
      %p478 = scmp.lt.s32.totalorder %s28, 4
      // Predicated region
      $region17: #{tpu_custom_call.1} parent=5 // pred_check
        %p479 = pneg %p478
      $region18: #{tpu_custom_call.1} parent=5 // pred_check_branch
        %481 = sbr.rel (%p479) target = $region20
      $region19: #{tpu_custom_call.1} parent=5 // pred_region
        // Predicated region
        $region21: #{tpu_custom_call.1} parent=19 // pred_check
          %p482 = pneg %p60
        $region22: #{tpu_custom_call.1} parent=19 // pred_check_branch
          %484 = sbr.rel (%p482) target = $region24
        $region23: #{tpu_custom_call.1} parent=19 // pred_region
          %s485 = sand.u32 %s28, 1
          %s486 = scalar_lea.sflag [#allocation3], %s485
          %s487 = sand.u32 %s50, 1
          %s488 = smul.addr %s487, 8
          %s489 = scalar_lea.vmem [#allocation2], %s488
          %491 = vsyncadd %s486, 0
          %s492 = smul.addr %s35, 8
          %s493 = scalar_lea.hbm %s0, %s492
          %s495 = sshll.u32 %s493, 4
          %s496 = int_to_ptr.hbm [resolvable:$true] %s495
          %s497 = sshll.u32 %s489, 4
          %s498 = int_to_ptr.vmem [resolvable:$true] %s497
          %500 = dma.hbm_to_vmem [thread:$0]  %s496, 128, %s498, %s486
        $region24: #{tpu_custom_call.1} parent=19 // pred_fallthru
          _
        // Predicated region
        $region25: #{tpu_custom_call.1} parent=19 // pred_check
          %p501 = pneg %p107
        $region26: #{tpu_custom_call.1} parent=19 // pred_check_branch
          %503 = sbr.rel (%p501) target = $region28
        $region27: #{tpu_custom_call.1} parent=19 // pred_region
          %s504 = sand.u32 %s28, 1
          %s505 = scalar_lea.sflag [#allocation3], %s504
          %s506 = sand.u32 %s97, 1
          %s507 = scalar_lea.vmem [#allocation7], %s506
          %509 = vsyncadd %s505, 0
          %s510 = scalar_lea.hbm %s2, %s35
          %s512 = sshll.u32 %s510, 4
          %s513 = int_to_ptr.hbm [resolvable:$true] %s512
          %s514 = sshll.u32 %s507, 4
          %s515 = int_to_ptr.vmem [resolvable:$true] %s514
          %517 = dma.hbm_to_vmem [thread:$0]  %s513, 16, %s515, %s505
        $region28: #{tpu_custom_call.1} parent=19 // pred_fallthru
          _
        // Predicated region
        $region29: #{tpu_custom_call.1} parent=19 // pred_check
          %p518 = pneg %p133
        $region30: #{tpu_custom_call.1} parent=19 // pred_check_branch
          %520 = sbr.rel (%p518) target = $region32
        $region31: #{tpu_custom_call.1} parent=19 // pred_region
          %p521 = scmp.lt.s32.totalorder %s36, 1
          %s522 = scalar_select %p521, %s36, 1
          %s523 = smul.addr %s522, 4
          %s524 = smul.addr %s523, 4
          %s525 = scalar_lea.vmem %s3, %s524
        $region32: #{tpu_custom_call.1} parent=19 // pred_fallthru
          _
        // Predicated region
        $region33: #{tpu_custom_call.1} parent=19 // pred_check
          %p526 = pneg %p159
        $region34: #{tpu_custom_call.1} parent=19 // pred_check_branch
          %528 = sbr.rel (%p526) target = $region36
        $region35: #{tpu_custom_call.1} parent=19 // pred_region
          %p529 = scmp.lt.s32.totalorder %s36, 1
          %s530 = scalar_select %p529, %s36, 1
          %s531 = scalar_lea.vmem %s4, %s530
        $region36: #{tpu_custom_call.1} parent=19 // pred_fallthru
          _
        // Predicated region
        $region37: #{tpu_custom_call.1} parent=19 // pred_check
          %p532 = pneg %p185
        $region38: #{tpu_custom_call.1} parent=19 // pred_check_branch
          %534 = sbr.rel (%p532) target = $region40
        $region39: #{tpu_custom_call.1} parent=19 // pred_region
          %p535 = scmp.lt.s32.totalorder %s36, 1
          %s536 = scalar_select %p535, %s36, 1
          %s537 = smul.addr %s536, 4
          %s538 = smul.addr %s537, 4
          %s539 = scalar_lea.vmem %s5, %s538
        $region40: #{tpu_custom_call.1} parent=19 // pred_fallthru
          _
        // Predicated region
        $region41: #{tpu_custom_call.1} parent=19 // pred_check
          %p540 = pneg %p211
        $region42: #{tpu_custom_call.1} parent=19 // pred_check_branch
          %542 = sbr.rel (%p540) target = $region44
        $region43: #{tpu_custom_call.1} parent=19 // pred_region
          %p543 = scmp.lt.s32.totalorder %s36, 1
          %s544 = scalar_select %p543, %s36, 1
          %s545 = scalar_lea.vmem %s6, %s544
        $region44: #{tpu_custom_call.1} parent=19 // pred_fallthru
          _
        // Predicated region
        $region45: #{tpu_custom_call.1} parent=19 // pred_check
          %p546 = pneg %p237
        $region46: #{tpu_custom_call.1} parent=19 // pred_check_branch
          %548 = sbr.rel (%p546) target = $region48
        $region47: #{tpu_custom_call.1} parent=19 // pred_region
          %s549 = sand.u32 %s28, 1
          %s550 = scalar_lea.sflag [#allocation3], %s549
          %s551 = sand.u32 %s227, 1
          %s552 = scalar_lea.vmem [#allocation8], %s551
          %554 = vsyncadd %s550, 0
          %s555 = scalar_lea.hbm %s7, %s36
          %s557 = sshll.u32 %s555, 4
          %s558 = int_to_ptr.hbm [resolvable:$true] %s557
          %s559 = sshll.u32 %s552, 4
          %s560 = int_to_ptr.vmem [resolvable:$true] %s559
          %562 = dma.hbm_to_vmem [thread:$0]  %s558, 16, %s560, %s550
        $region48: #{tpu_custom_call.1} parent=19 // pred_fallthru
          _
        // Predicated region
        $region49: #{tpu_custom_call.1} parent=19 // pred_check
          %p563 = pneg %p263
        $region50: #{tpu_custom_call.1} parent=19 // pred_check_branch
          %565 = sbr.rel (%p563) target = $region52
        $region51: #{tpu_custom_call.1} parent=19 // pred_region
          %p566 = scmp.lt.s32.totalorder %s36, 1
          %s567 = scalar_select %p566, %s36, 1
          %s568 = scalar_lea.vmem %s8, %s567
        $region52: #{tpu_custom_call.1} parent=19 // pred_fallthru
          _
        // Predicated region
        $region53: #{tpu_custom_call.1} parent=19 // pred_check
          %p569 = pneg %p289
        $region54: #{tpu_custom_call.1} parent=19 // pred_check_branch
          %571 = sbr.rel (%p569) target = $region56
        $region55: #{tpu_custom_call.1} parent=19 // pred_region
          %p572 = scmp.lt.s32.totalorder %s36, 1
          %s573 = scalar_select %p572, %s36, 1
          %s574 = smul.addr %s573, 4
          %s575 = smul.addr %s574, 4
          %s576 = scalar_lea.vmem %s9, %s575
        $region56: #{tpu_custom_call.1} parent=19 // pred_fallthru
          _
        // Predicated region
        $region57: #{tpu_custom_call.1} parent=19 // pred_check
          %p577 = pneg %p315
        $region58: #{tpu_custom_call.1} parent=19 // pred_check_branch
          %579 = sbr.rel (%p577) target = $region60
        $region59: #{tpu_custom_call.1} parent=19 // pred_region
          %p580 = scmp.lt.s32.totalorder %s36, 1
          %s581 = scalar_select %p580, %s36, 1
          %s582 = scalar_lea.vmem %s10, %s581
        $region60: #{tpu_custom_call.1} parent=19 // pred_fallthru
          _
        // Predicated region
        $region61: #{tpu_custom_call.1} parent=19 // pred_check
          %p583 = pneg %p341
        $region62: #{tpu_custom_call.1} parent=19 // pred_check_branch
          %585 = sbr.rel (%p583) target = $region64
        $region63: #{tpu_custom_call.1} parent=19 // pred_region
          %p586 = scmp.lt.s32.totalorder %s36, 1
          %s587 = scalar_select %p586, %s36, 1
          %s588 = smul.addr %s587, 8
          %s589 = smul.addr %s588, 4
          %s590 = scalar_lea.vmem %s11, %s589
        $region64: #{tpu_custom_call.1} parent=19 // pred_fallthru
          _
        // Predicated region
        $region65: #{tpu_custom_call.1} parent=19 // pred_check
          %p591 = pneg %p367
        $region66: #{tpu_custom_call.1} parent=19 // pred_check_branch
          %593 = sbr.rel (%p591) target = $region68
        $region67: #{tpu_custom_call.1} parent=19 // pred_region
          %p594 = scmp.lt.s32.totalorder %s36, 1
          %s595 = scalar_select %p594, %s36, 1
          %s596 = scalar_lea.vmem %s12, %s595
        $region68: #{tpu_custom_call.1} parent=19 // pred_fallthru
          _
        // Predicated region
        $region69: #{tpu_custom_call.1} parent=19 // pred_check
          %p597 = pneg %p393
        $region70: #{tpu_custom_call.1} parent=19 // pred_check_branch
          %599 = sbr.rel (%p597) target = $region72
        $region71: #{tpu_custom_call.1} parent=19 // pred_region
          %s600 = sand.u32 %s28, 1
          %s601 = scalar_lea.sflag [#allocation3], %s600
          %s602 = sand.u32 %s383, 1
          %s603 = scalar_lea.vmem [#allocation9], %s602
          %605 = vsyncadd %s601, 0
          %s606 = scalar_lea.hbm %s13, %s36
          %s608 = sshll.u32 %s606, 4
          %s609 = int_to_ptr.hbm [resolvable:$true] %s608
          %s610 = sshll.u32 %s603, 4
          %s611 = int_to_ptr.vmem [resolvable:$true] %s610
          %613 = dma.hbm_to_vmem [thread:$0]  %s609, 16, %s611, %s601
        $region72: #{tpu_custom_call.1} parent=19 // pred_fallthru
          _
        // Predicated region
        $region73: #{tpu_custom_call.1} parent=19 // pred_check
          %p614 = pneg %p419
        $region74: #{tpu_custom_call.1} parent=19 // pred_check_branch
          %616 = sbr.rel (%p614) target = $region76
        $region75: #{tpu_custom_call.1} parent=19 // pred_region
          %p617 = scmp.lt.s32.totalorder %s36, 1
          %s618 = scalar_select %p617, %s36, 1
          %s619 = scalar_lea.vmem %s14, %s618
        $region76: #{tpu_custom_call.1} parent=19 // pred_fallthru
          _
      $region20: #{tpu_custom_call.1} parent=5 // pred_fallthru
        _
      %p620 = scmp.le.s32.totalorder 1, %s28
      %p621 = scmp.lt.s32.totalorder %s28, 5
      %p622 = pnand %p620, %p621
      %p623 = pneg %p622
      // Predicated region
      $region77: #{tpu_custom_call.1} parent=5 // pred_check
        _
      $region78: #{tpu_custom_call.1} parent=5 // pred_check_branch
        %625 = sbr.rel (%p622) target = $region80
      $region79: #{tpu_custom_call.1} parent=5 // pred_region
        %s626 = ssub.s32 %s28, 1
        %s627 = sand.u32 %s33, 1
        %s628 = scalar_lea.sflag [#allocation3], %s627
        %s629 = sand.u32 %s53, 1
        %s630 = smul.addr %s629, 8
        %s631 = scalar_lea.vmem [#allocation2], %s630
        // Predicated region
        $region81: #{tpu_custom_call.1} parent=79 // pred_check
          %p632 = pneg %p66
        $region82: #{tpu_custom_call.1} parent=79 // pred_check_branch
          %634 = sbr.rel (%p632) target = $region84
        $region83: #{tpu_custom_call.1} parent=79 // pred_region
          %636 = dma.done %s628, 128
        $region84: #{tpu_custom_call.1} parent=79 // pred_fallthru
          _
        // Predicated region
        $region85: #{tpu_custom_call.1} parent=79 // pred_check
          %p637 = pneg %p87
        $region86: #{tpu_custom_call.1} parent=79 // pred_check_branch
          %639 = sbr.rel (%p637) target = $region88
        $region87: #{tpu_custom_call.1} parent=79 // pred_region
          %641 = dma.done [#allocation6], 128
        $region88: #{tpu_custom_call.1} parent=79 // pred_fallthru
          _
        %s642 = sand.u32 %s33, 1
        %s643 = scalar_lea.sflag [#allocation3], %s642
        %s644 = sand.u32 %s100, 1
        %s645 = scalar_lea.vmem [#allocation7], %s644
        // Predicated region
        $region89: #{tpu_custom_call.1} parent=79 // pred_check
          %p646 = pneg %p113
        $region90: #{tpu_custom_call.1} parent=79 // pred_check_branch
          %648 = sbr.rel (%p646) target = $region92
        $region91: #{tpu_custom_call.1} parent=79 // pred_region
          %650 = dma.done %s643, 16
        $region92: #{tpu_custom_call.1} parent=79 // pred_fallthru
          _
        %s651 = sand.u32 %s33, 1
        %s652 = scalar_lea.sflag [#allocation3], %s651
        %s653 = sand.u32 %s230, 1
        %s654 = scalar_lea.vmem [#allocation8], %s653
        // Predicated region
        $region93: #{tpu_custom_call.1} parent=79 // pred_check
          %p655 = pneg %p243
        $region94: #{tpu_custom_call.1} parent=79 // pred_check_branch
          %657 = sbr.rel (%p655) target = $region96
        $region95: #{tpu_custom_call.1} parent=79 // pred_region
          %659 = dma.done %s652, 16
        $region96: #{tpu_custom_call.1} parent=79 // pred_fallthru
          _
        %s660 = sand.u32 %s33, 1
        %s661 = scalar_lea.sflag [#allocation3], %s660
        %s662 = sand.u32 %s386, 1
        %s663 = scalar_lea.vmem [#allocation9], %s662
        // Predicated region
        $region97: #{tpu_custom_call.1} parent=79 // pred_check
          %p664 = pneg %p399
        $region98: #{tpu_custom_call.1} parent=79 // pred_check_branch
          %666 = sbr.rel (%p664) target = $region100
        $region99: #{tpu_custom_call.1} parent=79 // pred_region
          %668 = dma.done %s661, 16
        $region100: #{tpu_custom_call.1} parent=79 // pred_fallthru
          _
        %s669 = sand.u32 %s33, 1
        %s670 = scalar_lea.sflag [#allocation3], %s669
        %s671 = sand.u32 %s53, 1
        %s672 = smul.addr %s671, 8
        %s673 = scalar_lea.vmem [#allocation2], %s672
        %p674 = pneg %p66
        %p675 = pneg %p63
        %p676 = pneg %p87
        %p677 = pneg %p84
        %s678 = sand.u32 %s33, 1
        %s679 = scalar_lea.sflag [#allocation3], %s678
        %s680 = sand.u32 %s100, 1
        %s681 = scalar_lea.vmem [#allocation7], %s680
        %p682 = pneg %p113
        %p683 = pneg %p110
        %p684 = scmp.lt.s32.totalorder %s38, 1
        %s685 = scalar_select %p684, %s38, 1
        %s686 = smul.addr %s685, 4
        %s687 = smul.addr %s686, 4
        %s688 = scalar_lea.vmem %s3, %s687
        %p689 = pneg %p139
        %p690 = pneg %p136
        %p691 = scmp.lt.s32.totalorder %s38, 1
        %s692 = scalar_select %p691, %s38, 1
        %s693 = scalar_lea.vmem %s4, %s692
        %p694 = pneg %p165
        %p695 = pneg %p162
        %p696 = scmp.lt.s32.totalorder %s38, 1
        %s697 = scalar_select %p696, %s38, 1
        %s698 = smul.addr %s697, 4
        %s699 = smul.addr %s698, 4
        %s700 = scalar_lea.vmem %s5, %s699
        %p701 = pneg %p191
        %p702 = pneg %p188
        %p703 = scmp.lt.s32.totalorder %s38, 1
        %s704 = scalar_select %p703, %s38, 1
        %s705 = scalar_lea.vmem %s6, %s704
        %p706 = pneg %p217
        %p707 = pneg %p214
        %s708 = sand.u32 %s33, 1
        %s709 = scalar_lea.sflag [#allocation3], %s708
        %s710 = sand.u32 %s230, 1
        %s711 = scalar_lea.vmem [#allocation8], %s710
        %p712 = pneg %p243
        %p713 = pneg %p240
        %p714 = scmp.lt.s32.totalorder %s38, 1
        %s715 = scalar_select %p714, %s38, 1
        %s716 = scalar_lea.vmem %s8, %s715
        %p717 = pneg %p269
        %p718 = pneg %p266
        %p719 = scmp.lt.s32.totalorder %s38, 1
        %s720 = scalar_select %p719, %s38, 1
        %s721 = smul.addr %s720, 4
        %s722 = smul.addr %s721, 4
        %s723 = scalar_lea.vmem %s9, %s722
        %p724 = pneg %p295
        %p725 = pneg %p292
        %p726 = scmp.lt.s32.totalorder %s38, 1
        %s727 = scalar_select %p726, %s38, 1
        %s728 = scalar_lea.vmem %s10, %s727
        %p729 = pneg %p321
        %p730 = pneg %p318
        %p731 = scmp.lt.s32.totalorder %s38, 1
        %s732 = scalar_select %p731, %s38, 1
        %s733 = smul.addr %s732, 8
        %s734 = smul.addr %s733, 4
        %s735 = scalar_lea.vmem %s11, %s734
        %p736 = pneg %p347
        %p737 = pneg %p344
        %p738 = scmp.lt.s32.totalorder %s38, 1
        %s739 = scalar_select %p738, %s38, 1
        %s740 = scalar_lea.vmem %s12, %s739
        %p741 = pneg %p373
        %p742 = pneg %p370
        %s743 = sand.u32 %s33, 1
        %s744 = scalar_lea.sflag [#allocation3], %s743
        %s745 = sand.u32 %s386, 1
        %s746 = scalar_lea.vmem [#allocation9], %s745
        %p747 = pneg %p399
        %p748 = pneg %p396
        %p749 = scmp.lt.s32.totalorder %s38, 1
        %s750 = scalar_select %p749, %s38, 1
        %s751 = scalar_lea.vmem %s14, %s750
        %p752 = pneg %p425
        %p753 = pneg %p422
        %p754 = pneg %p451
        %p755 = pneg %p448
        %s756 = sand.u32 %s438, 1
        %s757 = scalar_lea.sflag [#allocation4], %s756
        %s758 = sand.u32 %s438, 1
        %s759 = smul.addr %s758, 8
        %s760 = scalar_lea.vmem [#allocation10], %s759
        %p761 = scmp.lt.s32.totalorder %s38, 1
        %s762 = scalar_select %p761, %s38, 1
        %s763 = smul.addr %s762, 4
        %s764 = smul.addr %s763, 4
        %s765 = scalar_lea.vmem %s3, %s764
        %p766 = scmp.lt.s32.totalorder %s38, 1
        %s767 = scalar_select %p766, %s38, 1
        %s768 = scalar_lea.vmem %s4, %s767
        %p769 = scmp.lt.s32.totalorder %s38, 1
        %s770 = scalar_select %p769, %s38, 1
        %s771 = smul.addr %s770, 4
        %s772 = smul.addr %s771, 4
        %s773 = scalar_lea.vmem %s5, %s772
        %p774 = scmp.lt.s32.totalorder %s38, 1
        %s775 = scalar_select %p774, %s38, 1
        %s776 = scalar_lea.vmem %s6, %s775
        %p777 = scmp.lt.s32.totalorder %s38, 1
        %s778 = scalar_select %p777, %s38, 1
        %s779 = scalar_lea.vmem %s8, %s778
        %p780 = scmp.lt.s32.totalorder %s38, 1
        %s781 = scalar_select %p780, %s38, 1
        %s782 = smul.addr %s781, 4
        %s783 = smul.addr %s782, 4
        %s784 = scalar_lea.vmem %s9, %s783
        %p785 = scmp.lt.s32.totalorder %s38, 1
        %s786 = scalar_select %p785, %s38, 1
        %s787 = scalar_lea.vmem %s10, %s786
        %p788 = scmp.lt.s32.totalorder %s38, 1
        %s789 = scalar_select %p788, %s38, 1
        %s790 = smul.addr %s789, 8
        %s791 = smul.addr %s790, 4
        %s792 = scalar_lea.vmem %s11, %s791
        %p793 = scmp.lt.s32.totalorder %s38, 1
        %s794 = scalar_select %p793, %s38, 1
        %s795 = scalar_lea.vmem %s12, %s794
        %p796 = scmp.lt.s32.totalorder %s38, 1
        %s797 = scalar_select %p796, %s38, 1
        %s798 = scalar_lea.vmem %s14, %s797
        %p800 = scmp.eq.s32.totalorder %s38, 0
        // Predicated region
        $region101: #{tpu_custom_call.1} parent=79 // pred_check
          %p801 = pneg %p800
        $region102: #{tpu_custom_call.1} parent=79 // pred_check_branch
          %803 = sbr.rel (%p801) target = $region104
        $region103: #{tpu_custom_call.1} parent=79 // pred_region
          %v804 = vld [vmem:[%s631] sm:$0xff]
          %v805 = vmul.f32 %v804, 5.656854
          %v806 = vld [vmem:[#allocation5] sm:$0xff]
          %v807 = vadd.f32 %v805, %v806
          %vm808 = vcmask 261120
          %809 = vst.msk [vmem:[%s760] sm:$0xff] %vm808, %v807
        $region104: #{tpu_custom_call.1} parent=79 // pred_fallthru
          _
        %v810 = vld [vmem:[%s760] sm:$0xff]
        %v811 = vpack.c.bf16 %v810, %v810
        %v812 = vld [vmem:[%s765] sm:$0xf]
        %v813 = vld [vmem:[%s765 + $0x4] sm:$0xf]
        %v814 = vld [vmem:[%s765 + $0x8] sm:$0xf]
        %v815 = vld [vmem:[%s765 + $0xc] sm:$0xf]
        %v816 = vld [vmem:[%s768] sm:$0x1]
        %v818 = vperm.slane %v816, 0
        %v824 = vunpack.c.l.b16 %v812
        %v825 = vunpack.c.l.b16 %v813
        %v826 = vunpack.c.l.b16 %v814
        %v827 = vunpack.c.l.b16 %v815
        %v828 = vpack.c.b16 %v825, %v824
        %v829 = vpack.c.b16 %v827, %v826
        %vm832 = vcmask 261120
        %v834 = vsel %vm832, %v811, 0
        %836 = vmatpush.bf16.msra.mxu0 0
        %837 = vmatpush.bf16.msra.mxu0 0
        %838 = vmatpush.bf16.msra.mxu0 0
        %839 = vmatpush.bf16.msra.mxu0 0
        %840 = vmatpush.bf16.msra.mxu0 0
        %841 = vmatpush.bf16.msra.mxu0 0
        %842 = vmatpush.bf16.msra.mxu0 %v829
        %843 = vmatpush.bf16.msra.mxu0 %v828
        %844 = vmatmul.bf16.gmra.mxu0 %v834
        %v845 = vpop.f32.mrf.mxu0
        %v846 = vadd.f32 %v818, %v845
        %v847 = vpop.f32.mrf.mxu0
        %848 = vdwg.mxu0
        %v849 = vmul.f32 %v846, 0.35355338
        %v850 = vpack.c.bf16 %v849, %v849
        %v851 = vpack.c.bf16 %v846, %v846
        %853 = vrot.lane.b32.xlu0 %v850, 120
        %v854 = vpop.permute.xlu0 %853
        %855 = vrot.lane.b32.xlu0 %v850, 112
        %v856 = vpop.permute.xlu0 %855
        %857 = vrot.lane.b32.xlu0 %v850, 104
        %v858 = vpop.permute.xlu0 %857
        %v861 = vpack.i.b16 %v854, %v850
        %v862 = vshrl.u32 %v850, 16
        %v863 = vshrl.u32 %v854, 16
        %v864 = vpack.i.b16 %v863, %v862
        %v867 = vpack.i.b16 %v858, %v856
        %v868 = vshrl.u32 %v856, 16
        %v869 = vshrl.u32 %v858, 16
        %v870 = vpack.i.b16 %v869, %v868
        %v873 = vunpack.c.l.s4 1983009808
        %v874 = vunpack.c.0.s8 %v873
        %v875 = vperm.slane %v861, %v874
        %v878 = vunpack.c.l.s4 1983009808
        %v879 = vunpack.c.0.s8 %v878
        %v880 = vperm.slane %v867, %v879
        %v881 = vrot.slane %v880, 4
        %vm882 = vcmask 1047556
        %v883 = vsel %vm882, %v881, %v875
        %v884 = vrot.slane %v875, 4
        %v885 = vsel %vm882, %v880, %v884
        %v887 = vunpack.c.l.s4 1934713408
        %v888 = vunpack.c.0.s8 %v887
        %v889 = vperm.slane %v883, %v888
        %v891 = vunpack.c.l.s4 1934713408
        %v892 = vunpack.c.0.s8 %v891
        %v893 = vperm.slane %v885, %v892
        %v894 = vrot.slane %v889, 4
        %v895 = vsel %vm882, 0, %v894
        %v896 = vrot.slane %v893, 4
        %v897 = vsel %vm882, 0, %v896
        %v900 = vunpack.c.l.s4 1983009808
        %v901 = vunpack.c.0.s8 %v900
        %v902 = vperm.slane %v864, %v901
        %v905 = vunpack.c.l.s4 1983009808
        %v906 = vunpack.c.0.s8 %v905
        %v907 = vperm.slane %v870, %v906
        %v908 = vrot.slane %v907, 4
        %v909 = vsel %vm882, %v908, %v902
        %v910 = vrot.slane %v902, 4
        %v911 = vsel %vm882, %v907, %v910
        %v913 = vunpack.c.l.s4 1934713408
        %v914 = vunpack.c.0.s8 %v913
        %v915 = vperm.slane %v909, %v914
        %v917 = vunpack.c.l.s4 1934713408
        %v918 = vunpack.c.0.s8 %v917
        %v919 = vperm.slane %v911, %v918
        %v920 = vrot.slane %v915, 4
        %v921 = vsel %vm882, 0, %v920
        %v922 = vrot.slane %v919, 4
        %v923 = vsel %vm882, 0, %v922
        %v924 = vsel %vm882, %v896, %v889
        %v926 = vunpack.c.l.s4 1983009808
        %v927 = vunpack.c.0.s8 %v926
        %v928 = vperm.slane %v924, %v927
        %v929 = vrot.slane %v897, 4
        %v930 = vsel %vm882, %v929, %v895
        %v932 = vunpack.c.l.s4 1983009808
        %v933 = vunpack.c.0.s8 %v932
        %v934 = vperm.slane %v930, %v933
        %v935 = vrot.slane %v934, 4
        %v936 = vsel %vm882, %v935, %v928
        %v938 = vunpack.c.l.s4 1934713408
        %v939 = vunpack.c.0.s8 %v938
        %v940 = vperm.slane %v936, %v939
        %v941 = vrot.slane %v940, 4
        %v942 = vsel %vm882, 0, %v941
        %v943 = vsel %vm882, %v922, %v915
        %v945 = vunpack.c.l.s4 1983009808
        %v946 = vunpack.c.0.s8 %v945
        %v947 = vperm.slane %v943, %v946
        %v948 = vrot.slane %v923, 4
        %v949 = vsel %vm882, %v948, %v921
        %v951 = vunpack.c.l.s4 1983009808
        %v952 = vunpack.c.0.s8 %v951
        %v953 = vperm.slane %v949, %v952
        %v954 = vrot.slane %v953, 4
        %v955 = vsel %vm882, %v954, %v947
        %v957 = vunpack.c.l.s4 1934713408
        %v958 = vunpack.c.0.s8 %v957
        %v959 = vperm.slane %v955, %v958
        %v960 = vrot.slane %v959, 4
        %v961 = vsel %vm882, 0, %v960
        %v964 = vpack.i.b16 %v959, %v940
        %v965 = vshrl.u32 %v940, 16
        %v966 = vshrl.u32 %v959, 16
        %v967 = vpack.i.b16 %v966, %v965
        %v970 = vpack.i.b16 %v961, %v942
        %v971 = vshrl.u32 %v942, 16
        %v972 = vshrl.u32 %v961, 16
        %v973 = vpack.i.b16 %v972, %v971
        %975 = vrot.lane.b32.xlu0 %v851, 120
        %v976 = vpop.permute.xlu0 %975
        %977 = vrot.lane.b32.xlu0 %v851, 112
        %v978 = vpop.permute.xlu0 %977
        %979 = vrot.lane.b32.xlu0 %v851, 104
        %v980 = vpop.permute.xlu0 %979
        %981 = vrot.lane.b32.xlu0 %v851, 96
        %v982 = vpop.permute.xlu0 %981
        %983 = vrot.lane.b32.xlu0 %v976, 96
        %v984 = vpop.permute.xlu0 %983
        %985 = vrot.lane.b32.xlu0 %v978, 96
        %v986 = vpop.permute.xlu0 %985
        %987 = vrot.lane.b32.xlu0 %v980, 96
        %v988 = vpop.permute.xlu0 %987
        %v991 = vpack.i.b16 %v984, %v982
        %v992 = vshrl.u32 %v982, 16
        %v993 = vshrl.u32 %v984, 16
        %v994 = vpack.i.b16 %v993, %v992
        %v997 = vpack.i.b16 %v988, %v986
        %v998 = vshrl.u32 %v986, 16
        %v999 = vshrl.u32 %v988, 16
        %v1000 = vpack.i.b16 %v999, %v998
        %v1003 = vunpack.c.l.s4 1983009808
        %v1004 = vunpack.c.0.s8 %v1003
        %v1005 = vperm.slane %v991, %v1004
        %v1008 = vunpack.c.l.s4 1983009808
        %v1009 = vunpack.c.0.s8 %v1008
        %v1010 = vperm.slane %v997, %v1009
        %v1011 = vrot.slane %v1010, 4
        %v1012 = vsel %vm882, %v1011, %v1005
        %v1013 = vrot.slane %v1005, 4
        %v1014 = vsel %vm882, %v1010, %v1013
        %v1016 = vunpack.c.l.s4 1934713408
        %v1017 = vunpack.c.0.s8 %v1016
        %v1018 = vperm.slane %v1012, %v1017
        %v1020 = vunpack.c.l.s4 1934713408
        %v1021 = vunpack.c.0.s8 %v1020
        %v1022 = vperm.slane %v1014, %v1021
        %v1023 = vrot.slane %v1018, 4
        %v1024 = vsel %vm882, 0, %v1023
        %v1025 = vrot.slane %v1022, 4
        %v1026 = vsel %vm882, 0, %v1025
        %v1029 = vunpack.c.l.s4 1983009808
        %v1030 = vunpack.c.0.s8 %v1029
        %v1031 = vperm.slane %v994, %v1030
        %v1034 = vunpack.c.l.s4 1983009808
        %v1035 = vunpack.c.0.s8 %v1034
        %v1036 = vperm.slane %v1000, %v1035
        %v1037 = vrot.slane %v1036, 4
        %v1038 = vsel %vm882, %v1037, %v1031
        %v1039 = vrot.slane %v1031, 4
        %v1040 = vsel %vm882, %v1036, %v1039
        %v1042 = vunpack.c.l.s4 1934713408
        %v1043 = vunpack.c.0.s8 %v1042
        %v1044 = vperm.slane %v1038, %v1043
        %v1046 = vunpack.c.l.s4 1934713408
        %v1047 = vunpack.c.0.s8 %v1046
        %v1048 = vperm.slane %v1040, %v1047
        %v1049 = vrot.slane %v1044, 4
        %v1050 = vsel %vm882, 0, %v1049
        %v1051 = vrot.slane %v1048, 4
        %v1052 = vsel %vm882, 0, %v1051
        %1053 = vxpose.xlu0.c.b16.start [1/8] %v1018, 128
        %1054 = vxpose.xlu0.c.b16.cont [2/8] 0, 128
        %1055 = vxpose.xlu0.c.b16.cont [3/8] 0, 128
        %1056 = vxpose.xlu0.c.b16.cont [4/8] 0, 128
        %1057 = vxpose.xlu0.c.b16.cont [5/8] 0, 128
        %1058 = vxpose.xlu0.c.b16.cont [6/8] 0, 128
        %1059 = vxpose.xlu0.c.b16.cont [7/8] 0, 128
        %1060 = vxpose.xlu0.c.b16.end [8/8] 0, 128
        %v1061 = vpop.trf.xlu0
        %v1062 = vpop.trf.xlu0
        %v1063 = vpop.trf.xlu0
        %v1064 = vpop.trf.xlu0
        %v1065 = vpop.trf.xlu0
        %v1066 = vpop.trf.xlu0
        %v1067 = vpop.trf.xlu0
        %v1068 = vpop.trf.xlu0
        %1069 = vxpose.xlu0.c.b16.start [1/8] %v1044, 128
        %1070 = vxpose.xlu0.c.b16.cont [2/8] 0, 128
        %1071 = vxpose.xlu0.c.b16.cont [3/8] 0, 128
        %1072 = vxpose.xlu0.c.b16.cont [4/8] 0, 128
        %1073 = vxpose.xlu0.c.b16.cont [5/8] 0, 128
        %1074 = vxpose.xlu0.c.b16.cont [6/8] 0, 128
        %1075 = vxpose.xlu0.c.b16.cont [7/8] 0, 128
        %1076 = vxpose.xlu0.c.b16.end [8/8] 0, 128
        %v1077 = vpop.trf.xlu0
        %v1078 = vpop.trf.xlu0
        %v1079 = vpop.trf.xlu0
        %v1080 = vpop.trf.xlu0
        %v1081 = vpop.trf.xlu0
        %v1082 = vpop.trf.xlu0
        %v1083 = vpop.trf.xlu0
        %v1084 = vpop.trf.xlu0
        %1085 = vxpose.xlu0.c.b16.start [1/8] %v1024, 128
        %1086 = vxpose.xlu0.c.b16.cont [2/8] 0, 128
        %1087 = vxpose.xlu0.c.b16.cont [3/8] 0, 128
        %1088 = vxpose.xlu0.c.b16.cont [4/8] 0, 128
        %1089 = vxpose.xlu0.c.b16.cont [5/8] 0, 128
        %1090 = vxpose.xlu0.c.b16.cont [6/8] 0, 128
        %1091 = vxpose.xlu0.c.b16.cont [7/8] 0, 128
        %1092 = vxpose.xlu0.c.b16.end [8/8] 0, 128
        %v1093 = vpop.trf.xlu0
        %v1094 = vpop.trf.xlu0
        %v1095 = vpop.trf.xlu0
        %v1096 = vpop.trf.xlu0
        %v1097 = vpop.trf.xlu0
        %v1098 = vpop.trf.xlu0
        %v1099 = vpop.trf.xlu0
        %v1100 = vpop.trf.xlu0
        %1101 = vxpose.xlu0.c.b16.start [1/8] %v1050, 128
        %1102 = vxpose.xlu0.c.b16.cont [2/8] 0, 128
        %1103 = vxpose.xlu0.c.b16.cont [3/8] 0, 128
        %1104 = vxpose.xlu0.c.b16.cont [4/8] 0, 128
        %1105 = vxpose.xlu0.c.b16.cont [5/8] 0, 128
        %1106 = vxpose.xlu0.c.b16.cont [6/8] 0, 128
        %1107 = vxpose.xlu0.c.b16.cont [7/8] 0, 128
        %1108 = vxpose.xlu0.c.b16.end [8/8] 0, 128
        %v1109 = vpop.trf.xlu0
        %v1110 = vpop.trf.xlu0
        %v1111 = vpop.trf.xlu0
        %v1112 = vpop.trf.xlu0
        %v1113 = vpop.trf.xlu0
        %v1114 = vpop.trf.xlu0
        %v1115 = vpop.trf.xlu0
        %v1116 = vpop.trf.xlu0
        %1117 = vxpose.xlu0.c.b16.start [1/8] %v1022, 128
        %1118 = vxpose.xlu0.c.b16.cont [2/8] 0, 128
        %1119 = vxpose.xlu0.c.b16.cont [3/8] 0, 128
        %1120 = vxpose.xlu0.c.b16.cont [4/8] 0, 128
        %1121 = vxpose.xlu0.c.b16.cont [5/8] 0, 128
        %1122 = vxpose.xlu0.c.b16.cont [6/8] 0, 128
        %1123 = vxpose.xlu0.c.b16.cont [7/8] 0, 128
        %1124 = vxpose.xlu0.c.b16.end [8/8] 0, 128
        %v1125 = vpop.trf.xlu0
        %v1126 = vpop.trf.xlu0
        %v1127 = vpop.trf.xlu0
        %v1128 = vpop.trf.xlu0
        %v1129 = vpop.trf.xlu0
        %v1130 = vpop.trf.xlu0
        %v1131 = vpop.trf.xlu0
        %v1132 = vpop.trf.xlu0
        %1133 = vxpose.xlu0.c.b16.start [1/8] %v1048, 128
        %1134 = vxpose.xlu0.c.b16.cont [2/8] 0, 128
        %1135 = vxpose.xlu0.c.b16.cont [3/8] 0, 128
        %1136 = vxpose.xlu0.c.b16.cont [4/8] 0, 128
        %1137 = vxpose.xlu0.c.b16.cont [5/8] 0, 128
        %1138 = vxpose.xlu0.c.b16.cont [6/8] 0, 128
        %1139 = vxpose.xlu0.c.b16.cont [7/8] 0, 128
        %1140 = vxpose.xlu0.c.b16.end [8/8] 0, 128
        %v1141 = vpop.trf.xlu0
        %v1142 = vpop.trf.xlu0
        %v1143 = vpop.trf.xlu0
        %v1144 = vpop.trf.xlu0
        %v1145 = vpop.trf.xlu0
        %v1146 = vpop.trf.xlu0
        %v1147 = vpop.trf.xlu0
        %v1148 = vpop.trf.xlu0
        %1149 = vxpose.xlu0.c.b16.start [1/8] %v1026, 128
        %1150 = vxpose.xlu0.c.b16.cont [2/8] 0, 128
        %1151 = vxpose.xlu0.c.b16.cont [3/8] 0, 128
        %1152 = vxpose.xlu0.c.b16.cont [4/8] 0, 128
        %1153 = vxpose.xlu0.c.b16.cont [5/8] 0, 128
        %1154 = vxpose.xlu0.c.b16.cont [6/8] 0, 128
        %1155 = vxpose.xlu0.c.b16.cont [7/8] 0, 128
        %1156 = vxpose.xlu0.c.b16.end [8/8] 0, 128
        %v1157 = vpop.trf.xlu0
        %v1158 = vpop.trf.xlu0
        %v1159 = vpop.trf.xlu0
        %v1160 = vpop.trf.xlu0
        %v1161 = vpop.trf.xlu0
        %v1162 = vpop.trf.xlu0
        %v1163 = vpop.trf.xlu0
        %v1164 = vpop.trf.xlu0
        %1165 = vxpose.xlu0.c.b16.start [1/8] %v1052, 128
        %1166 = vxpose.xlu0.c.b16.cont [2/8] 0, 128
        %1167 = vxpose.xlu0.c.b16.cont [3/8] 0, 128
        %1168 = vxpose.xlu0.c.b16.cont [4/8] 0, 128
        %1169 = vxpose.xlu0.c.b16.cont [5/8] 0, 128
        %1170 = vxpose.xlu0.c.b16.cont [6/8] 0, 128
        %1171 = vxpose.xlu0.c.b16.cont [7/8] 0, 128
        %1172 = vxpose.xlu0.c.b16.end [8/8] 0, 128
        %v1173 = vpop.trf.xlu0
        %v1174 = vpop.trf.xlu0
        %v1175 = vpop.trf.xlu0
        %v1176 = vpop.trf.xlu0
        %v1177 = vpop.trf.xlu0
        %v1178 = vpop.trf.xlu0
        %v1179 = vpop.trf.xlu0
        %v1180 = vpop.trf.xlu0
        %v1181 = vrot.slane %v1125, 4
        %v1182 = vsel %vm882, %v1181, %v1061
        %v1184 = vunpack.c.l.s4 1983009808
        %v1185 = vunpack.c.0.s8 %v1184
        %v1186 = vperm.slane %v1182, %v1185
        %v1187 = vrot.slane %v1157, 4
        %v1188 = vsel %vm882, %v1187, %v1093
        %v1190 = vunpack.c.l.s4 1983009808
        %v1191 = vunpack.c.0.s8 %v1190
        %v1192 = vperm.slane %v1188, %v1191
        %v1193 = vrot.slane %v1192, 4
        %v1194 = vsel %vm882, %v1193, %v1186
        %v1195 = vrot.slane %v1186, 4
        %v1196 = vsel %vm882, %v1192, %v1195
        %v1198 = vunpack.c.l.s4 1934713408
        %v1199 = vunpack.c.0.s8 %v1198
        %v1200 = vperm.slane %v1194, %v1199
        %v1202 = vunpack.c.l.s4 1934713408
        %v1203 = vunpack.c.0.s8 %v1202
        %v1204 = vperm.slane %v1196, %v1203
        %v1205 = vrot.slane %v1200, 4
        %v1206 = vsel %vm882, 0, %v1205
        %v1207 = vrot.slane %v1204, 4
        %v1208 = vsel %vm882, 0, %v1207
        %v1209 = vrot.slane %v1141, 4
        %v1210 = vsel %vm882, %v1209, %v1077
        %v1212 = vunpack.c.l.s4 1983009808
        %v1213 = vunpack.c.0.s8 %v1212
        %v1214 = vperm.slane %v1210, %v1213
        %v1215 = vrot.slane %v1173, 4
        %v1216 = vsel %vm882, %v1215, %v1109
        %v1218 = vunpack.c.l.s4 1983009808
        %v1219 = vunpack.c.0.s8 %v1218
        %v1220 = vperm.slane %v1216, %v1219
        %v1221 = vrot.slane %v1220, 4
        %v1222 = vsel %vm882, %v1221, %v1214
        %v1223 = vrot.slane %v1214, 4
        %v1224 = vsel %vm882, %v1220, %v1223
        %v1226 = vunpack.c.l.s4 1934713408
        %v1227 = vunpack.c.0.s8 %v1226
        %v1228 = vperm.slane %v1222, %v1227
        %v1230 = vunpack.c.l.s4 1934713408
        %v1231 = vunpack.c.0.s8 %v1230
        %v1232 = vperm.slane %v1224, %v1231
        %v1233 = vrot.slane %v1228, 4
        %v1234 = vsel %vm882, 0, %v1233
        %v1235 = vrot.slane %v1232, 4
        %v1236 = vsel %vm882, 0, %v1235
        %v1239 = vpack.i.b16 %v1228, %v1200
        %v1241 = vshrl.u32 %v1200, 16
        %v1242 = vshrl.u32 %v1228, 16
        %v1243 = vpack.i.b16 %v1242, %v1241
        %v1247 = vpack.i.b16 %v1234, %v1206
        %v1249 = vshrl.u32 %v1206, 16
        %v1250 = vshrl.u32 %v1234, 16
        %v1251 = vpack.i.b16 %v1250, %v1249
        %v1255 = vpack.i.b16 %v1232, %v1204
        %v1257 = vshrl.u32 %v1204, 16
        %v1258 = vshrl.u32 %v1232, 16
        %v1259 = vpack.i.b16 %v1258, %v1257
        %v1263 = vpack.i.b16 %v1236, %v1208
        %v1265 = vshrl.u32 %v1208, 16
        %v1266 = vshrl.u32 %v1236, 16
        %v1267 = vpack.i.b16 %v1266, %v1265
        %1269 = vxpose.xlu0.c.b16.start [1/8] %v1239, 128
        %1270 = vxpose.xlu0.c.b16.cont [2/8] 0, 128
        %1271 = vxpose.xlu0.c.b16.cont [3/8] 0, 128
        %1272 = vxpose.xlu0.c.b16.cont [4/8] 0, 128
        %1273 = vxpose.xlu0.c.b16.cont [5/8] 0, 128
        %1274 = vxpose.xlu0.c.b16.cont [6/8] 0, 128
        %1275 = vxpose.xlu0.c.b16.cont [7/8] 0, 128
        %1276 = vxpose.xlu0.c.b16.end [8/8] 0, 128
        %v1277 = vpop.trf.xlu0
        %v1278 = vpop.trf.xlu0
        %v1279 = vpop.trf.xlu0
        %v1280 = vpop.trf.xlu0
        %v1281 = vpop.trf.xlu0
        %v1282 = vpop.trf.xlu0
        %v1283 = vpop.trf.xlu0
        %v1284 = vpop.trf.xlu0
        %1285 = vxpose.xlu0.c.b16.start [1/8] %v1243, 128
        %1286 = vxpose.xlu0.c.b16.cont [2/8] 0, 128
        %1287 = vxpose.xlu0.c.b16.cont [3/8] 0, 128
        %1288 = vxpose.xlu0.c.b16.cont [4/8] 0, 128
        %1289 = vxpose.xlu0.c.b16.cont [5/8] 0, 128
        %1290 = vxpose.xlu0.c.b16.cont [6/8] 0, 128
        %1291 = vxpose.xlu0.c.b16.cont [7/8] 0, 128
        %1292 = vxpose.xlu0.c.b16.end [8/8] 0, 128
        %v1293 = vpop.trf.xlu0
        %v1294 = vpop.trf.xlu0
        %v1295 = vpop.trf.xlu0
        %v1296 = vpop.trf.xlu0
        %v1297 = vpop.trf.xlu0
        %v1298 = vpop.trf.xlu0
        %v1299 = vpop.trf.xlu0
        %v1300 = vpop.trf.xlu0
        %1301 = vxpose.xlu0.c.b16.start [1/8] %v1247, 128
        %1302 = vxpose.xlu0.c.b16.cont [2/8] 0, 128
        %1303 = vxpose.xlu0.c.b16.cont [3/8] 0, 128
        %1304 = vxpose.xlu0.c.b16.cont [4/8] 0, 128
        %1305 = vxpose.xlu0.c.b16.cont [5/8] 0, 128
        %1306 = vxpose.xlu0.c.b16.cont [6/8] 0, 128
        %1307 = vxpose.xlu0.c.b16.cont [7/8] 0, 128
        %1308 = vxpose.xlu0.c.b16.end [8/8] 0, 128
        %v1309 = vpop.trf.xlu0
        %v1310 = vpop.trf.xlu0
        %v1311 = vpop.trf.xlu0
        %v1312 = vpop.trf.xlu0
        %v1313 = vpop.trf.xlu0
        %v1314 = vpop.trf.xlu0
        %v1315 = vpop.trf.xlu0
        %v1316 = vpop.trf.xlu0
        %1317 = vxpose.xlu0.c.b16.start [1/8] %v1251, 128
        %1318 = vxpose.xlu0.c.b16.cont [2/8] 0, 128
        %1319 = vxpose.xlu0.c.b16.cont [3/8] 0, 128
        %1320 = vxpose.xlu0.c.b16.cont [4/8] 0, 128
        %1321 = vxpose.xlu0.c.b16.cont [5/8] 0, 128
        %1322 = vxpose.xlu0.c.b16.cont [6/8] 0, 128
        %1323 = vxpose.xlu0.c.b16.cont [7/8] 0, 128
        %1324 = vxpose.xlu0.c.b16.end [8/8] 0, 128
        %v1325 = vpop.trf.xlu0
        %v1326 = vpop.trf.xlu0
        %v1327 = vpop.trf.xlu0
        %v1328 = vpop.trf.xlu0
        %v1329 = vpop.trf.xlu0
        %v1330 = vpop.trf.xlu0
        %v1331 = vpop.trf.xlu0
        %v1332 = vpop.trf.xlu0
        %1333 = vxpose.xlu0.c.b16.start [1/8] %v1255, 128
        %1334 = vxpose.xlu0.c.b16.cont [2/8] 0, 128
        %1335 = vxpose.xlu0.c.b16.cont [3/8] 0, 128
        %1336 = vxpose.xlu0.c.b16.cont [4/8] 0, 128
        %1337 = vxpose.xlu0.c.b16.cont [5/8] 0, 128
        %1338 = vxpose.xlu0.c.b16.cont [6/8] 0, 128
        %1339 = vxpose.xlu0.c.b16.cont [7/8] 0, 128
        %1340 = vxpose.xlu0.c.b16.end [8/8] 0, 128
        %v1341 = vpop.trf.xlu0
        %v1342 = vpop.trf.xlu0
        %v1343 = vpop.trf.xlu0
        %v1344 = vpop.trf.xlu0
        %v1345 = vpop.trf.xlu0
        %v1346 = vpop.trf.xlu0
        %v1347 = vpop.trf.xlu0
        %v1348 = vpop.trf.xlu0
        %1349 = vxpose.xlu0.c.b16.start [1/8] %v1259, 128
        %1350 = vxpose.xlu0.c.b16.cont [2/8] 0, 128
        %1351 = vxpose.xlu0.c.b16.cont [3/8] 0, 128
        %1352 = vxpose.xlu0.c.b16.cont [4/8] 0, 128
        %1353 = vxpose.xlu0.c.b16.cont [5/8] 0, 128
        %1354 = vxpose.xlu0.c.b16.cont [6/8] 0, 128
        %1355 = vxpose.xlu0.c.b16.cont [7/8] 0, 128
        %1356 = vxpose.xlu0.c.b16.end [8/8] 0, 128
        %v1357 = vpop.trf.xlu0
        %v1358 = vpop.trf.xlu0
        %v1359 = vpop.trf.xlu0
        %v1360 = vpop.trf.xlu0
        %v1361 = vpop.trf.xlu0
        %v1362 = vpop.trf.xlu0
        %v1363 = vpop.trf.xlu0
        %v1364 = vpop.trf.xlu0
        %1365 = vxpose.xlu0.c.b16.start [1/8] %v1263, 128
        %1366 = vxpose.xlu0.c.b16.cont [2/8] 0, 128
        %1367 = vxpose.xlu0.c.b16.cont [3/8] 0, 128
        %1368 = vxpose.xlu0.c.b16.cont [4/8] 0, 128
        %1369 = vxpose.xlu0.c.b16.cont [5/8] 0, 128
        %1370 = vxpose.xlu0.c.b16.cont [6/8] 0, 128
        %1371 = vxpose.xlu0.c.b16.cont [7/8] 0, 128
        %1372 = vxpose.xlu0.c.b16.end [8/8] 0, 128
        %v1373 = vpop.trf.xlu0
        %v1374 = vpop.trf.xlu0
        %v1375 = vpop.trf.xlu0
        %v1376 = vpop.trf.xlu0
        %v1377 = vpop.trf.xlu0
        %v1378 = vpop.trf.xlu0
        %v1379 = vpop.trf.xlu0
        %v1380 = vpop.trf.xlu0
        %1381 = vxpose.xlu0.c.b16.start [1/8] %v1267, 128
        %1382 = vxpose.xlu0.c.b16.cont [2/8] 0, 128
        %1383 = vxpose.xlu0.c.b16.cont [3/8] 0, 128
        %1384 = vxpose.xlu0.c.b16.cont [4/8] 0, 128
        %1385 = vxpose.xlu0.c.b16.cont [5/8] 0, 128
        %1386 = vxpose.xlu0.c.b16.cont [6/8] 0, 128
        %1387 = vxpose.xlu0.c.b16.cont [7/8] 0, 128
        %1388 = vxpose.xlu0.c.b16.end [8/8] 0, 128
        %v1389 = vpop.trf.xlu0
        %v1390 = vpop.trf.xlu0
        %v1391 = vpop.trf.xlu0
        %v1392 = vpop.trf.xlu0
        %v1393 = vpop.trf.xlu0
        %v1394 = vpop.trf.xlu0
        %v1395 = vpop.trf.xlu0
        %v1396 = vpop.trf.xlu0
        %v1397 = vrot.slane %v1341, 4
        %v1398 = vsel %vm882, %v1397, %v1277
        %v1400 = vunpack.c.l.s4 1983009808
        %v1401 = vunpack.c.0.s8 %v1400
        %v1402 = vperm.slane %v1398, %v1401
        %v1403 = vrot.slane %v1373, 4
        %v1404 = vsel %vm882, %v1403, %v1309
        %v1406 = vunpack.c.l.s4 1983009808
        %v1407 = vunpack.c.0.s8 %v1406
        %v1408 = vperm.slane %v1404, %v1407
        %v1409 = vrot.slane %v1408, 4
        %v1410 = vsel %vm882, %v1409, %v1402
        %v1412 = vunpack.c.l.s4 1934713408
        %v1413 = vunpack.c.0.s8 %v1412
        %v1414 = vperm.slane %v1410, %v1413
        %v1415 = vrot.slane %v1414, 4
        %v1416 = vsel %vm882, 0, %v1415
        %v1417 = vrot.slane %v1357, 4
        %v1418 = vsel %vm882, %v1417, %v1293
        %v1420 = vunpack.c.l.s4 1983009808
        %v1421 = vunpack.c.0.s8 %v1420
        %v1422 = vperm.slane %v1418, %v1421
        %v1423 = vrot.slane %v1389, 4
        %v1424 = vsel %vm882, %v1423, %v1325
        %v1426 = vunpack.c.l.s4 1983009808
        %v1427 = vunpack.c.0.s8 %v1426
        %v1428 = vperm.slane %v1424, %v1427
        %v1429 = vrot.slane %v1428, 4
        %v1430 = vsel %vm882, %v1429, %v1422
        %v1432 = vunpack.c.l.s4 1934713408
        %v1433 = vunpack.c.0.s8 %v1432
        %v1434 = vperm.slane %v1430, %v1433
        %v1435 = vrot.slane %v1434, 4
        %v1436 = vsel %vm882, 0, %v1435
        %v1439 = vpack.i.b16 %v1434, %v1414
        %v1440 = vshrl.u32 %v1414, 16
        %v1441 = vshrl.u32 %v1434, 16
        %v1442 = vpack.i.b16 %v1441, %v1440
        %v1445 = vpack.i.b16 %v1436, %v1416
        %v1446 = vshrl.u32 %v1416, 16
        %v1447 = vshrl.u32 %v1436, 16
        %v1448 = vpack.i.b16 %v1447, %v1446
        %1449 = vrot.lane.b32.xlu0 %v851, 64
        %v1450 = vpop.permute.xlu0 %1449
        %1451 = vrot.lane.b32.xlu0 %v976, 64
        %v1452 = vpop.permute.xlu0 %1451
        %1453 = vrot.lane.b32.xlu0 %v978, 64
        %v1454 = vpop.permute.xlu0 %1453
        %1455 = vrot.lane.b32.xlu0 %v980, 64
        %v1456 = vpop.permute.xlu0 %1455
        %v1459 = vpack.i.b16 %v1452, %v1450
        %v1460 = vshrl.u32 %v1450, 16
        %v1461 = vshrl.u32 %v1452, 16
        %v1462 = vpack.i.b16 %v1461, %v1460
        %v1465 = vpack.i.b16 %v1456, %v1454
        %v1466 = vshrl.u32 %v1454, 16
        %v1467 = vshrl.u32 %v1456, 16
        %v1468 = vpack.i.b16 %v1467, %v1466
        %v1471 = vunpack.c.l.s4 1983009808
        %v1472 = vunpack.c.0.s8 %v1471
        %v1473 = vperm.slane %v1459, %v1472
        %v1476 = vunpack.c.l.s4 1983009808
        %v1477 = vunpack.c.0.s8 %v1476
        %v1478 = vperm.slane %v1465, %v1477
        %v1479 = vrot.slane %v1478, 4
        %v1480 = vsel %vm882, %v1479, %v1473
        %v1481 = vrot.slane %v1473, 4
        %v1482 = vsel %vm882, %v1478, %v1481
        %v1484 = vunpack.c.l.s4 1934713408
        %v1485 = vunpack.c.0.s8 %v1484
        %v1486 = vperm.slane %v1480, %v1485
        %v1488 = vunpack.c.l.s4 1934713408
        %v1489 = vunpack.c.0.s8 %v1488
        %v1490 = vperm.slane %v1482, %v1489
        %v1491 = vrot.slane %v1486, 4
        %v1492 = vsel %vm882, 0, %v1491
        %v1493 = vrot.slane %v1490, 4
        %v1494 = vsel %vm882, 0, %v1493
        %v1497 = vunpack.c.l.s4 1983009808
        %v1498 = vunpack.c.0.s8 %v1497
        %v1499 = vperm.slane %v1462, %v1498
        %v1502 = vunpack.c.l.s4 1983009808
        %v1503 = vunpack.c.0.s8 %v1502
        %v1504 = vperm.slane %v1468, %v1503
        %v1505 = vrot.slane %v1504, 4
        %v1506 = vsel %vm882, %v1505, %v1499
        %v1507 = vrot.slane %v1499, 4
        %v1508 = vsel %vm882, %v1504, %v1507
        %v1510 = vunpack.c.l.s4 1934713408
        %v1511 = vunpack.c.0.s8 %v1510
        %v1512 = vperm.slane %v1506, %v1511
        %v1514 = vunpack.c.l.s4 1934713408
        %v1515 = vunpack.c.0.s8 %v1514
        %v1516 = vperm.slane %v1508, %v1515
        %v1517 = vrot.slane %v1512, 4
        %v1518 = vsel %vm882, 0, %v1517
        %v1519 = vrot.slane %v1516, 4
        %v1520 = vsel %vm882, 0, %v1519
        %v1521 = vsel %vm882, %v1493, %v1486
        %v1523 = vunpack.c.l.s4 1983009808
        %v1524 = vunpack.c.0.s8 %v1523
        %v1525 = vperm.slane %v1521, %v1524
        %v1526 = vrot.slane %v1494, 4
        %v1527 = vsel %vm882, %v1526, %v1492
        %v1529 = vunpack.c.l.s4 1983009808
        %v1530 = vunpack.c.0.s8 %v1529
        %v1531 = vperm.slane %v1527, %v1530
        %v1532 = vrot.slane %v1531, 4
        %v1533 = vsel %vm882, %v1532, %v1525
        %v1535 = vunpack.c.l.s4 1934713408
        %v1536 = vunpack.c.0.s8 %v1535
        %v1537 = vperm.slane %v1533, %v1536
        %v1538 = vrot.slane %v1537, 4
        %v1539 = vsel %vm882, 0, %v1538
        %v1540 = vsel %vm882, %v1519, %v1512
        %v1542 = vunpack.c.l.s4 1983009808
        %v1543 = vunpack.c.0.s8 %v1542
        %v1544 = vperm.slane %v1540, %v1543
        %v1545 = vrot.slane %v1520, 4
        %v1546 = vsel %vm882, %v1545, %v1518
        %v1548 = vunpack.c.l.s4 1983009808
        %v1549 = vunpack.c.0.s8 %v1548
        %v1550 = vperm.slane %v1546, %v1549
        %v1551 = vrot.slane %v1550, 4
        %v1552 = vsel %vm882, %v1551, %v1544
        %v1554 = vunpack.c.l.s4 1934713408
        %v1555 = vunpack.c.0.s8 %v1554
        %v1556 = vperm.slane %v1552, %v1555
        %v1557 = vrot.slane %v1556, 4
        %v1558 = vsel %vm882, 0, %v1557
        %v1561 = vpack.i.b16 %v1556, %v1537
        %v1562 = vshrl.u32 %v1537, 16
        %v1563 = vshrl.u32 %v1556, 16
        %v1564 = vpack.i.b16 %v1563, %v1562
        %v1567 = vpack.i.b16 %v1558, %v1539
        %v1568 = vshrl.u32 %v1539, 16
        %v1569 = vshrl.u32 %v1558, 16
        %v1570 = vpack.i.b16 %v1569, %v1568
        %v1571 = vld [vmem:[%s645] sm:$0x1]
        %v1572 = vld [vmem:[%s773] sm:$0xf]
        %v1573 = vld [vmem:[%s773 + $0x4] sm:$0xf]
        %v1574 = vld [vmem:[%s773 + $0x8] sm:$0xf]
        %v1575 = vld [vmem:[%s773 + $0xc] sm:$0xf]
        %v1576 = vld [vmem:[%s776] sm:$0x1]
        %v1577 = vld [vmem:[%s654] sm:$0x1]
        %v1578 = vld [vmem:[%s779] sm:$0x1]
        %v1579 = vld [vmem:[%s784] sm:$0xf]
        %v1580 = vld [vmem:[%s784 + $0x4] sm:$0xf]
        %v1581 = vld [vmem:[%s784 + $0x8] sm:$0xf]
        %v1582 = vld [vmem:[%s784 + $0xc] sm:$0xf]
        %v1583 = vld [vmem:[%s787] sm:$0x1]
        %v1584 = vld [vmem:[%s792] sm:$0xf]
        %v1585 = vld [vmem:[%s792 + $0x4] sm:$0xf]
        %v1586 = vld [vmem:[%s792 + $0x8] sm:$0xf]
        %v1587 = vld [vmem:[%s792 + $0xc] sm:$0xf]
        %v1588 = vld [vmem:[%s792 + $0x10] sm:$0xf]
        %v1589 = vld [vmem:[%s792 + $0x14] sm:$0xf]
        %v1590 = vld [vmem:[%s792 + $0x18] sm:$0xf]
        %v1591 = vld [vmem:[%s792 + $0x1c] sm:$0xf]
        %v1592 = vld [vmem:[%s795] sm:$0x1]
        %v1593 = vld [vmem:[%s663] sm:$0x1]
        %v1594 = vld [vmem:[%s798] sm:$0x1]
        %vm1595 = vcmask 64512
        %v1597 = vsel %vm1595, %v964, 0
        %vm1599 = vcmask 1043456
        %v1601 = vsel %vm1599, %v1439, 0
        %1603 = vmatpush.bf16.msra.mxu0 0
        %1604 = vmatpush.bf16.msra.mxu0 0
        %1605 = vmatpush.bf16.msra.mxu0 0
        %1606 = vmatpush.bf16.msra.mxu0 0
        %1607 = vmatpush.bf16.msra.mxu0 0
        %1608 = vmatpush.bf16.msra.mxu0 0
        %1609 = vmatpush.bf16.msra.mxu0 0
        %1610 = vmatpush.bf16.msra.mxu0 %v1601
        %1611 = vmatmul.bf16.gmra.mxu0 %v1597
        %v1612 = vpop.f32.mrf.mxu0
        %v1613 = vadd.f32 0.0, %v1612
        %v1614 = vpop.f32.mrf.mxu0
        %1615 = vdwg.mxu0
        %v1617 = vsel %vm1595, %v967, 0
        %v1620 = vsel %vm1599, %v1442, 0
        %1622 = vmatpush.bf16.msra.mxu0 0
        %1623 = vmatpush.bf16.msra.mxu0 0
        %1624 = vmatpush.bf16.msra.mxu0 0
        %1625 = vmatpush.bf16.msra.mxu0 0
        %1626 = vmatpush.bf16.msra.mxu0 0
        %1627 = vmatpush.bf16.msra.mxu0 0
        %1628 = vmatpush.bf16.msra.mxu0 0
        %1629 = vmatpush.bf16.msra.mxu0 %v1620
        %1630 = vmatmul.bf16.gmra.mxu0 %v1617
        %v1631 = vpop.f32.mrf.mxu0
        %v1632 = vadd.f32 0.0, %v1631
        %v1633 = vpop.f32.mrf.mxu0
        %1634 = vdwg.mxu0
        %v1636 = vsel %vm1595, %v970, 0
        %v1639 = vsel %vm1599, %v1445, 0
        %1641 = vmatpush.bf16.msra.mxu0 0
        %1642 = vmatpush.bf16.msra.mxu0 0
        %1643 = vmatpush.bf16.msra.mxu0 0
        %1644 = vmatpush.bf16.msra.mxu0 0
        %1645 = vmatpush.bf16.msra.mxu0 0
        %1646 = vmatpush.bf16.msra.mxu0 0
        %1647 = vmatpush.bf16.msra.mxu0 0
        %1648 = vmatpush.bf16.msra.mxu0 %v1639
        %1649 = vmatmul.bf16.gmra.mxu0 %v1636
        %v1650 = vpop.f32.mrf.mxu0
        %v1651 = vadd.f32 0.0, %v1650
        %v1652 = vpop.f32.mrf.mxu0
        %1653 = vdwg.mxu0
        %v1655 = vsel %vm1595, %v973, 0
        %v1658 = vsel %vm1599, %v1448, 0
        %1660 = vmatpush.bf16.msra.mxu0 0
        %1661 = vmatpush.bf16.msra.mxu0 0
        %1662 = vmatpush.bf16.msra.mxu0 0
        %1663 = vmatpush.bf16.msra.mxu0 0
        %1664 = vmatpush.bf16.msra.mxu0 0
        %1665 = vmatpush.bf16.msra.mxu0 0
        %1666 = vmatpush.bf16.msra.mxu0 0
        %1667 = vmatpush.bf16.msra.mxu0 %v1658
        %1668 = vmatmul.bf16.gmra.mxu0 %v1655
        %v1669 = vpop.f32.mrf.mxu0
        %v1670 = vadd.f32 0.0, %v1669
        %v1671 = vpop.f32.mrf.mxu0
        %1672 = vdwg.mxu0
        %v1674 = vperm.slane %v1571, 0
        %v1676 = vadd.f32 %v1613, %v1674
        %v1677 = vadd.f32 %v1632, %v1674
        %v1678 = vadd.f32 %v1651, %v1674
        %v1679 = vadd.f32 %v1670, %v1674
        %v1680 = vsel %vm1595, %v1676, -inf
        %1681 = vmax.xlane.f32.xlu0 %v1680
        %v1682 = vpop.xlane.xlu0 %1681
        %v1683 = vsel %vm1595, %v1677, -inf
        %1684 = vmax.xlane.f32.xlu0 %v1683
        %v1685 = vpop.xlane.xlu0 %1684
        %v1686 = vsel %vm1595, %v1678, -inf
        %1687 = vmax.xlane.f32.xlu0 %v1686
        %v1688 = vpop.xlane.xlu0 %1687
        %v1689 = vsel %vm1595, %v1679, -inf
        %1690 = vmax.xlane.f32.xlu0 %v1689
        %v1691 = vpop.xlane.xlu0 %1690
        %v1692 = vsub.f32 %v1676, %v1682
        %v1693 = vsub.f32 %v1677, %v1685
        %v1694 = vsub.f32 %v1678, %v1688
        %v1695 = vsub.f32 %v1679, %v1691
        %v1696 = vmul.f32 %v1692, 1.442695
        %v1697 = vpow.pop %v1696
        %v1698 = vmul.f32 %v1693, 1.442695
        %v1699 = vpow.pop %v1698
        %v1700 = vmul.f32 %v1694, 1.442695
        %v1701 = vpow.pop %v1700
        %v1702 = vmul.f32 %v1695, 1.442695
        %v1703 = vpow.pop %v1702
        %v1704 = vsel %vm1595, %v1697, 0.0
        %1705 = vadd.xlane.f32.xlu0 %v1704
        %v1706 = vpop.xlane.xlu0 %1705
        %v1707 = vsel %vm1595, %v1699, 0.0
        %1708 = vadd.xlane.f32.xlu0 %v1707
        %v1709 = vpop.xlane.xlu0 %1708
        %v1710 = vsel %vm1595, %v1701, 0.0
        %1711 = vadd.xlane.f32.xlu0 %v1710
        %v1712 = vpop.xlane.xlu0 %1711
        %v1713 = vsel %vm1595, %v1703, 0.0
        %1714 = vadd.xlane.f32.xlu0 %v1713
        %v1715 = vpop.xlane.xlu0 %1714
        %v1716 = vpack.c.bf16 %v1697, %v1697
        %v1717 = vpack.c.bf16 %v1699, %v1699
        %v1718 = vpack.c.bf16 %v1701, %v1701
        %v1719 = vpack.c.bf16 %v1703, %v1703
        %v1721 = vsel %vm1595, %v1716, 0
        %v1724 = vsel %vm1599, %v1561, 0
        %1726 = vmatpush.bf16.msra.mxu0 0
        %1727 = vmatpush.bf16.msra.mxu0 0
        %1728 = vmatpush.bf16.msra.mxu0 0
        %1729 = vmatpush.bf16.msra.mxu0 0
        %1730 = vmatpush.bf16.msra.mxu0 0
        %1731 = vmatpush.bf16.msra.mxu0 0
        %1732 = vmatpush.bf16.msra.mxu0 0
        %1733 = vmatpush.bf16.msra.mxu0 %v1724
        %1734 = vmatmul.bf16.gmra.mxu0 %v1721
        %v1735 = vpop.f32.mrf.mxu0
        %v1736 = vadd.f32 0.0, %v1735
        %v1737 = vpop.f32.mrf.mxu0
        %1738 = vdwg.mxu0
        %v1740 = vsel %vm1595, %v1717, 0
        %v1743 = vsel %vm1599, %v1564, 0
        %1745 = vmatpush.bf16.msra.mxu0 0
        %1746 = vmatpush.bf16.msra.mxu0 0
        %1747 = vmatpush.bf16.msra.mxu0 0
        %1748 = vmatpush.bf16.msra.mxu0 0
        %1749 = vmatpush.bf16.msra.mxu0 0
        %1750 = vmatpush.bf16.msra.mxu0 0
        %1751 = vmatpush.bf16.msra.mxu0 0
        %1752 = vmatpush.bf16.msra.mxu0 %v1743
        %1753 = vmatmul.bf16.gmra.mxu0 %v1740
        %v1754 = vpop.f32.mrf.mxu0
        %v1755 = vadd.f32 0.0, %v1754
        %v1756 = vpop.f32.mrf.mxu0
        %1757 = vdwg.mxu0
        %v1759 = vsel %vm1595, %v1718, 0
        %v1762 = vsel %vm1599, %v1567, 0
        %1764 = vmatpush.bf16.msra.mxu0 0
        %1765 = vmatpush.bf16.msra.mxu0 0
        %1766 = vmatpush.bf16.msra.mxu0 0
        %1767 = vmatpush.bf16.msra.mxu0 0
        %1768 = vmatpush.bf16.msra.mxu0 0
        %1769 = vmatpush.bf16.msra.mxu0 0
        %1770 = vmatpush.bf16.msra.mxu0 0
        %1771 = vmatpush.bf16.msra.mxu0 %v1762
        %1772 = vmatmul.bf16.gmra.mxu0 %v1759
        %v1773 = vpop.f32.mrf.mxu0
        %v1774 = vadd.f32 0.0, %v1773
        %v1775 = vpop.f32.mrf.mxu0
        %1776 = vdwg.mxu0
        %v1778 = vsel %vm1595, %v1719, 0
        %v1781 = vsel %vm1599, %v1570, 0
        %1783 = vmatpush.bf16.msra.mxu0 0
        %1784 = vmatpush.bf16.msra.mxu0 0
        %1785 = vmatpush.bf16.msra.mxu0 0
        %1786 = vmatpush.bf16.msra.mxu0 0
        %1787 = vmatpush.bf16.msra.mxu0 0
        %1788 = vmatpush.bf16.msra.mxu0 0
        %1789 = vmatpush.bf16.msra.mxu0 0
        %1790 = vmatpush.bf16.msra.mxu0 %v1781
        %1791 = vmatmul.bf16.gmra.mxu0 %v1778
        %v1792 = vpop.f32.mrf.mxu0
        %v1793 = vadd.f32 0.0, %v1792
        %v1794 = vpop.f32.mrf.mxu0
        %1795 = vdwg.mxu0
        %v1796 = vrcp.pop %v1706
        %v1797 = vrcp.pop %v1709
        %v1798 = vrcp.pop %v1712
        %v1799 = vrcp.pop %v1715
        %v1800 = vmul.f32 %v1736, %v1796
        %v1801 = vmul.f32 %v1755, %v1797
        %v1802 = vmul.f32 %v1774, %v1798
        %v1803 = vmul.f32 %v1793, %v1799
        %v1804 = vrot.slane %v1802, 4
        %vm1805 = vcmask 1047556
        %v1806 = vsel %vm1805, %v1804, %v1800
        %v1807 = vrot.slane %v1800, 4
        %v1808 = vsel %vm1805, %v1802, %v1807
        %v1810 = vunpack.c.l.s4 1983009808
        %v1811 = vunpack.c.0.s8 %v1810
        %v1812 = vperm.slane %v1806, %v1811
        %v1814 = vunpack.c.l.s4 1983009808
        %v1815 = vunpack.c.0.s8 %v1814
        %v1816 = vperm.slane %v1808, %v1815
        %v1817 = vrot.slane %v1803, 4
        %v1818 = vsel %vm1805, %v1817, %v1801
        %v1819 = vrot.slane %v1801, 4
        %v1820 = vsel %vm1805, %v1803, %v1819
        %v1822 = vunpack.c.l.s4 1983009808
        %v1823 = vunpack.c.0.s8 %v1822
        %v1824 = vperm.slane %v1818, %v1823
        %v1826 = vunpack.c.l.s4 1983009808
        %v1827 = vunpack.c.0.s8 %v1826
        %v1828 = vperm.slane %v1820, %v1827
        %v1829 = vrot.slane %v1824, 4
        %v1830 = vsel %vm1805, %v1829, %v1812
        %v1831 = vrot.slane %v1812, 4
        %v1832 = vsel %vm1805, %v1824, %v1831
        %v1834 = vunpack.c.l.s4 1934713408
        %v1835 = vunpack.c.0.s8 %v1834
        %v1836 = vperm.slane %v1830, %v1835
        %v1838 = vunpack.c.l.s4 1934713408
        %v1839 = vunpack.c.0.s8 %v1838
        %v1840 = vperm.slane %v1832, %v1839
        %v1841 = vrot.slane %v1828, 4
        %v1842 = vsel %vm1805, %v1841, %v1816
        %v1843 = vrot.slane %v1816, 4
        %v1844 = vsel %vm1805, %v1828, %v1843
        %v1846 = vunpack.c.l.s4 1934713408
        %v1847 = vunpack.c.0.s8 %v1846
        %v1848 = vperm.slane %v1842, %v1847
        %v1850 = vunpack.c.l.s4 1934713408
        %v1851 = vunpack.c.0.s8 %v1850
        %v1852 = vperm.slane %v1844, %v1851
        %v1853 = vrot.slane %v1836, 4
        %v1854 = vsel %vm1805, 0.0, %v1853
        %v1855 = vrot.slane %v1840, 4
        %v1856 = vsel %vm1805, 0.0, %v1855
        %v1857 = vrot.slane %v1848, 4
        %v1858 = vsel %vm1805, 0.0, %v1857
        %v1859 = vrot.slane %v1852, 4
        %v1860 = vsel %vm1805, 0.0, %v1859
        %v1861 = vsel %vm1805, %v1855, %v1836
        %v1863 = vunpack.c.l.s4 1983009808
        %v1864 = vunpack.c.0.s8 %v1863
        %v1865 = vperm.slane %v1861, %v1864
        %v1866 = vrot.slane %v1856, 4
        %v1867 = vsel %vm1805, %v1866, %v1854
        %v1869 = vunpack.c.l.s4 1983009808
        %v1870 = vunpack.c.0.s8 %v1869
        %v1871 = vperm.slane %v1867, %v1870
        %v1872 = vsel %vm1805, %v1859, %v1848
        %v1874 = vunpack.c.l.s4 1983009808
        %v1875 = vunpack.c.0.s8 %v1874
        %v1876 = vperm.slane %v1872, %v1875
        %v1877 = vrot.slane %v1860, 4
        %v1878 = vsel %vm1805, %v1877, %v1858
        %v1880 = vunpack.c.l.s4 1983009808
        %v1881 = vunpack.c.0.s8 %v1880
        %v1882 = vperm.slane %v1878, %v1881
        %v1883 = vrot.slane %v1871, 4
        %v1884 = vsel %vm1805, %v1883, %v1865
        %v1885 = vrot.slane %v1865, 4
        %v1886 = vsel %vm1805, %v1871, %v1885
        %v1888 = vunpack.c.l.s4 1934713408
        %v1889 = vunpack.c.0.s8 %v1888
        %v1890 = vperm.slane %v1884, %v1889
        %v1892 = vunpack.c.l.s4 1934713408
        %v1893 = vunpack.c.0.s8 %v1892
        %v1894 = vperm.slane %v1886, %v1893
        %v1895 = vrot.slane %v1882, 4
        %v1896 = vsel %vm1805, %v1895, %v1876
        %v1897 = vrot.slane %v1876, 4
        %v1898 = vsel %vm1805, %v1882, %v1897
        %v1900 = vunpack.c.l.s4 1934713408
        %v1901 = vunpack.c.0.s8 %v1900
        %v1902 = vperm.slane %v1896, %v1901
        %v1904 = vunpack.c.l.s4 1934713408
        %v1905 = vunpack.c.0.s8 %v1904
        %v1906 = vperm.slane %v1898, %v1905
        %v1907 = vrot.slane %v1902, 4
        %v1908 = vsel %vm1805, %v1907, %v1890
        %v1909 = vrot.slane %v1890, 4
        %v1910 = vsel %vm1805, %v1902, %v1909
        %v1911 = vrot.slane %v1906, 4
        %v1912 = vsel %vm1805, %v1911, %v1894
        %v1913 = vrot.slane %v1894, 4
        %v1914 = vsel %vm1805, %v1906, %v1913
        %1916 = vrot.lane.b32.xlu0 %v1910, 8
        %v1917 = vpop.permute.xlu0 %1916
        %1920 = vrot.lane.b32.xlu0 %v1912, 16
        %v1921 = vpop.permute.xlu0 %1920
        %1924 = vrot.lane.b32.xlu0 %v1914, 24
        %v1925 = vpop.permute.xlu0 %1924
        %v1927 = vsel %vm1595, %v1908, %v1917
        %vm1928 = vcmask 130048
        %v1929 = vsel %vm1928, %v1927, %v1921
        %vm1930 = vcmask 195584
        %v1931 = vsel %vm1930, %v1929, %v1925
        %v1932 = vpack.c.bf16 %v1931, %v1931
        %v1934 = vperm.slane %v1576, 0
        %v1940 = vunpack.c.l.b16 %v1572
        %v1941 = vunpack.c.l.b16 %v1573
        %v1942 = vunpack.c.l.b16 %v1574
        %v1943 = vunpack.c.l.b16 %v1575
        %v1944 = vpack.c.b16 %v1941, %v1940
        %v1945 = vpack.c.b16 %v1943, %v1942
        %v1949 = vsel %vm832, %v1932, 0
        %1951 = vmatpush.bf16.msra.mxu0 0
        %1952 = vmatpush.bf16.msra.mxu0 0
        %1953 = vmatpush.bf16.msra.mxu0 0
        %1954 = vmatpush.bf16.msra.mxu0 0
        %1955 = vmatpush.bf16.msra.mxu0 0
        %1956 = vmatpush.bf16.msra.mxu0 0
        %1957 = vmatpush.bf16.msra.mxu0 %v1945
        %1958 = vmatpush.bf16.msra.mxu0 %v1944
        %1959 = vmatmul.bf16.gmra.mxu0 %v1949
        %v1960 = vpop.f32.mrf.mxu0
        %v1961 = vadd.f32 %v1934, %v1960
        %v1962 = vpop.f32.mrf.mxu0
        %1963 = vdwg.mxu0
        %v1964 = vadd.f32 %v810, %v1961
        %v1965 = vsel %vm832, %v1964, 0.0
        %1966 = vadd.xlane.f32.xlu0 %v1965
        %v1967 = vpop.xlane.xlu0 %1966
        %v1968 = vrcp.pop 32.0
        %v1969 = vmul.f32 32.0, %v1968
        %v1970 = vsub.f32 1.0, %v1969
        %v1971 = vmul.f32 %v1968, %v1970
        %v1972 = vadd.f32 %v1968, %v1971
        %vm1973 = vweird.f32 %v1968
        %v1974 = vsel %vm1973, %v1968, %v1972
        %v1975 = vmul.f32 %v1967, %v1974
        %v1976 = vsub.f32 %v1964, %v1975
        %v1977 = vmul.f32 %v1976, %v1976
        %v1978 = vsel %vm832, %v1977, 0.0
        %1979 = vadd.xlane.f32.xlu0 %v1978
        %v1980 = vpop.xlane.xlu0 %1979
        %v1981 = vmul.f32 %v1980, %v1974
        %v1982 = vadd.f32 %v1981, 1e-05
        %v1983 = vrsqrt.pop %v1982
        %v1984 = vmul.f32 %v1983, %v1982
        %v1985 = vmul.f32 %v1984, %v1983
        %v1986 = vmul.f32 0.5, %v1985
        %v1987 = vsub.f32 1.5, %v1986
        %v1988 = vmul.f32 %v1983, %v1987
        %vm1989 = vweird.f32 %v1982
        %vm1990 = vweird.f32 %v1983
        %vm1991 = vmor %vm1989, %vm1990
        %v1992 = vsel %vm1991, %v1983, %v1988
        %v1993 = vmul.f32 %v1976, %v1992
        %v1995 = vperm.slane %v1577, 0
        %v1997 = vmul.f32 %v1993, %v1995
        %v1999 = vperm.slane %v1578, 0
        %v2001 = vadd.f32 %v1997, %v1999
        %v2002 = vpack.c.bf16 %v2001, %v2001
        %v2004 = vperm.slane %v1583, 0
        %v2010 = vunpack.c.l.b16 %v1579
        %v2011 = vunpack.c.l.b16 %v1580
        %v2012 = vunpack.c.l.b16 %v1581
        %v2013 = vunpack.c.l.b16 %v1582
        %v2014 = vpack.c.b16 %v2011, %v2010
        %v2015 = vpack.c.b16 %v2013, %v2012
        %v2019 = vsel %vm832, %v2002, 0
        %2021 = vmatpush.bf16.msra.mxu0 0
        %2022 = vmatpush.bf16.msra.mxu0 0
        %2023 = vmatpush.bf16.msra.mxu0 0
        %2024 = vmatpush.bf16.msra.mxu0 0
        %2025 = vmatpush.bf16.msra.mxu0 0
        %2026 = vmatpush.bf16.msra.mxu0 0
        %2027 = vmatpush.bf16.msra.mxu0 %v2015
        %2028 = vmatpush.bf16.msra.mxu0 %v2014
        %2029 = vmatmul.bf16.gmra.mxu0 %v2019
        %v2030 = vpop.f32.mrf.mxu0
        %v2031 = vadd.f32 %v2004, %v2030
        %v2032 = vpop.f32.mrf.mxu0
        %2033 = vdwg.mxu0
        %v2034 = vmul.f32 %v2031, 0.5
        %v2035 = vmul.f32 %v2031, 0.044715
        %v2036 = vmul.f32 %v2035, %v2031
        %v2037 = vmul.f32 %v2036, %v2031
        %v2038 = vadd.f32 %v2031, %v2037
        %v2039 = vmul.f32 %v2038, 0.7978846
        %v2040 = vtanh.pop %v2039
        %v2041 = vadd.f32 %v2040, 1.0
        %v2042 = vmul.f32 %v2034, %v2041
        %v2043 = vpack.c.bf16 %v2042, %v2042
        %v2045 = vperm.slane %v1592, 0
        %v2055 = vunpack.c.l.b16 %v1584
        %v2056 = vunpack.c.l.b16 %v1585
        %v2057 = vunpack.c.l.b16 %v1586
        %v2058 = vunpack.c.l.b16 %v1587
        %v2059 = vunpack.c.l.b16 %v1588
        %v2060 = vunpack.c.l.b16 %v1589
        %v2061 = vunpack.c.l.b16 %v1590
        %v2062 = vunpack.c.l.b16 %v1591
        %v2063 = vpack.c.b16 %v2056, %v2055
        %v2064 = vpack.c.b16 %v2058, %v2057
        %v2065 = vpack.c.b16 %v2060, %v2059
        %v2066 = vpack.c.b16 %v2062, %v2061
        %vm2071 = vcmask 523264
        %v2073 = vsel %vm2071, %v2043, 0
        %2075 = vmatpush.bf16.msra.mxu0 0
        %2076 = vmatpush.bf16.msra.mxu0 0
        %2077 = vmatpush.bf16.msra.mxu0 0
        %2078 = vmatpush.bf16.msra.mxu0 0
        %2079 = vmatpush.bf16.msra.mxu0 %v2066
        %2080 = vmatpush.bf16.msra.mxu0 %v2065
        %2081 = vmatpush.bf16.msra.mxu0 %v2064
        %2082 = vmatpush.bf16.msra.mxu0 %v2063
        %2083 = vmatmul.bf16.gmra.mxu0 %v2073
        %v2084 = vpop.f32.mrf.mxu0
        %v2085 = vadd.f32 %v2045, %v2084
        %v2086 = vpop.f32.mrf.mxu0
        %2087 = vdwg.mxu0
        %v2088 = vadd.f32 %v2001, %v2085
        %v2089 = vsel %vm832, %v2088, 0.0
        %2090 = vadd.xlane.f32.xlu0 %v2089
        %v2091 = vpop.xlane.xlu0 %2090
        %v2092 = vmul.f32 %v2091, %v1974
        %v2093 = vsub.f32 %v2088, %v2092
        %v2094 = vmul.f32 %v2093, %v2093
        %v2095 = vsel %vm832, %v2094, 0.0
        %2096 = vadd.xlane.f32.xlu0 %v2095
        %v2097 = vpop.xlane.xlu0 %2096
        %v2098 = vmul.f32 %v2097, %v1974
        %v2099 = vadd.f32 %v2098, 1e-05
        %v2100 = vrsqrt.pop %v2099
        %v2101 = vmul.f32 %v2100, %v2099
        %v2102 = vmul.f32 %v2101, %v2100
        %v2103 = vmul.f32 0.5, %v2102
        %v2104 = vsub.f32 1.5, %v2103
        %v2105 = vmul.f32 %v2100, %v2104
        %vm2106 = vweird.f32 %v2099
        %vm2107 = vweird.f32 %v2100
        %vm2108 = vmor %vm2106, %vm2107
        %v2109 = vsel %vm2108, %v2100, %v2105
        %v2110 = vmul.f32 %v2093, %v2109
        %v2112 = vperm.slane %v1593, 0
        %v2114 = vmul.f32 %v2110, %v2112
        %v2116 = vperm.slane %v1594, 0
        %v2118 = vadd.f32 %v2114, %v2116
        %2119 = vst.msk [vmem:[%s760] sm:$0xff] %vm832, %v2118
        %s2120 = sand.u32 %s438, 1
        %s2121 = scalar_lea.sflag [#allocation4], %s2120
        %s2122 = sand.u32 %s438, 1
        %s2123 = smul.addr %s2122, 8
        %s2124 = scalar_lea.vmem [#allocation10], %s2123
        // Predicated region
        $region105: #{tpu_custom_call.1} parent=79 // pred_check
          %p2125 = pneg %p448
        $region106: #{tpu_custom_call.1} parent=79 // pred_check_branch
          %2127 = sbr.rel (%p2125) target = $region108
        $region107: #{tpu_custom_call.1} parent=79 // pred_region
          %2129 = vsyncadd %s2121, 0
          %s2130 = smul.addr %s37, 8
          %s2131 = scalar_lea.hbm %s15, %s2130
          %s2133 = sshll.u32 %s2124, 4
          %s2134 = int_to_ptr.vmem [resolvable:$true] %s2133
          %s2135 = sshll.u32 %s2131, 4
          %s2136 = int_to_ptr.hbm [resolvable:$true] %s2135
          %2138 = dma.vmem_to_hbm [thread:$0]  %s2134, 128, %s2136, %s2121
        $region108: #{tpu_custom_call.1} parent=79 // pred_fallthru
          _
      $region80: #{tpu_custom_call.1} parent=5 // pred_fallthru
        _
      %p2139 = scmp.le.s32.totalorder 2, %s28
      // Predicated region
      $region109: #{tpu_custom_call.1} parent=5 // pred_check
        %p2140 = pneg %p2139
      $region110: #{tpu_custom_call.1} parent=5 // pred_check_branch
        %2142 = sbr.rel (%p2140) target = $region112
      $region111: #{tpu_custom_call.1} parent=5 // pred_region
        %s2143 = ssub.s32 %s28, 2
        // Predicated region
        $region113: #{tpu_custom_call.1} parent=111 // pred_check
          %p2144 = pneg %p454
        $region114: #{tpu_custom_call.1} parent=111 // pred_check_branch
          %2146 = sbr.rel (%p2144) target = $region116
        $region115: #{tpu_custom_call.1} parent=111 // pred_region
          %s2147 = sand.u32 %s439, 1
          %s2148 = scalar_lea.sflag [#allocation4], %s2147
          %s2149 = sand.u32 %s439, 1
          %s2150 = smul.addr %s2149, 8
          %s2151 = scalar_lea.vmem [#allocation10], %s2150
          %2153 = dma.done %s2148, 128
        $region116: #{tpu_custom_call.1} parent=111 // pred_fallthru
          _
      $region112: #{tpu_custom_call.1} parent=5 // pred_fallthru
        _
    $region6: #{tpu_custom_call.1} parent=1 // loop_footer
      %s32 = sadd.s32 1, %s28
    $region7: #{tpu_custom_call.1} parent=1 // loop_footer_branch
      %27 = sbr.rel target = $region3
    $region8: #{tpu_custom_call.1} parent=1 // loop_exit
      _
    %2154 = vsyncpa [#allocation3], 1
    %s2155 = scalar_lea.sflag [#allocation3], 1
    %2156 = vsyncpa %s2155, 1
    %2157 = vsyncpa [#allocation6], 1
    %2158 = vsyncpa [#allocation4], 1
    %s2159 = scalar_lea.sflag [#allocation4], 1
    %2160 = vsyncpa %s2159, 1

</llo_original>
